<compile_context>
chip_gen: v7x
topology: tpu7x:2x2x1
jax: 0.10.0
libtpu: 0.0.40
codegen_flags: <defaults>
</compile_context>

<pallas_src>
import functools
import math

import jax
import jax.numpy as jnp
from jax.experimental import pallas as pl
from jax.experimental.pallas import tpu as pltpu

BN_EPS = 1e-5


def _vmem_budget_bytes():
    """Generation-aware VMEM budget (~75% of physical, clamped)."""
    cap = 128 * 1024 * 1024
    try:
        cap = int(pltpu.get_tpu_info().vmem_capacity_bytes)
    except Exception:
        pass
    return max(32 * 1024 * 1024, min(int(cap * 0.75), 112 * 1024 * 1024))


# ---------------------------------------------------------------------------
# Path 1: fully-resident single pallas_call (small M).
# ---------------------------------------------------------------------------
def _make_resident_kernel(M, c_dims):
    _, c1, c2, c3, c4 = c_dims
    inv_m = 1.0 / float(M)

    def bn_relu(y, gamma_row, beta_row, ones_row):
        # Training-mode BN folded into one per-channel scale/shift; the
        # per-channel column sums run on the MXU (ones-row matmul), not the XLU.
        s1 = jnp.dot(ones_row, y, preferred_element_type=jnp.float32)        # (1, C)
        s2 = jnp.dot(ones_row, y * y, preferred_element_type=jnp.float32)    # (1, C)
        mean = s1 * inv_m
        var = s2 * inv_m - mean * mean            # biased variance (PyTorch BN fwd)
        scale = gamma_row * jax.lax.rsqrt(var + BN_EPS)
        shift = beta_row - mean * scale
        return jnp.maximum(y * scale + shift, 0.0)

    def kernel(x_ref, w1_ref, w2_ref, w3_ref, w4t_ref, pb_ref, out_ref):
        ones_row = jnp.ones((1, M), jnp.float32)

        h = x_ref[...]                                                        # (M, cin) bf16
        y = jnp.dot(h, w1_ref[...], preferred_element_type=jnp.float32)      # (M, c1)
        h = bn_relu(y, pb_ref[0:1, 0:c1], pb_ref[4:5, 0:c1], ones_row).astype(jnp.bfloat16)
        y = jnp.dot(h, w2_ref[...], preferred_element_type=jnp.float32)      # (M, c2)
        h = bn_relu(y, pb_ref[1:2, 0:c2], pb_ref[5:6, 0:c2], ones_row).astype(jnp.bfloat16)
        y = jnp.dot(h, w3_ref[...], preferred_element_type=jnp.float32)      # (M, c3)
        h = bn_relu(y, pb_ref[2:3, 0:c3], pb_ref[6:7, 0:c3], ones_row).astype(jnp.bfloat16)

        if c4 == 1:
            # Last block in channel-major (1, M): lane-dense store; scalar BN
            # stats via XLU reduce (frees the MXU result FIFO earlier).
            y4 = jax.lax.dot_general(
                w4t_ref[...], h, (((1,), (1,)), ((), ())),
                preferred_element_type=jnp.float32)                           # (1, M)
            s1 = jnp.sum(y4, keepdims=True)                                   # (1, 1)
            s2 = jnp.sum(y4 * y4, keepdims=True)
            mean = s1 * inv_m
            var = s2 * inv_m - mean * mean
            scale = pb_ref[3:4, 0:1] * jax.lax.rsqrt(var + BN_EPS)
            shift = pb_ref[7:8, 0:1] - mean * scale
            out_ref[...] = jnp.maximum(y4 * scale + shift, 0.0)               # (1, M)
        else:
            # TODO(synk): lane-dense (c4, M) orientation for general out_channels.
            y4 = jax.lax.dot_general(
                h, w4t_ref[...], (((1,), (1,)), ((), ())),
                preferred_element_type=jnp.float32)                           # (M, c4)
            out_ref[...] = bn_relu(y4, pb_ref[3:4, 0:c4], pb_ref[7:8, 0:c4], ones_row)

    return kernel


def _resident_forward(x2d, params, M, c_dims, vmem_limit):
    _, c1, c2, c3, c4 = c_dims
    (w1, g1, b1), (w2, g2, b2), (w3, g3, b3), (w4, g4, b4) = params

    # Pack the 8 per-channel BN vectors into one lane-padded (8, Cpad) slab.
    c_pad = max(128, ((max(c1, c2, c3, c4) + 127) // 128) * 128)

    def _row(v):
        return jnp.pad(v, (0, c_pad - v.shape[0]))

    pb_slab = jnp.stack([_row(g1), _row(g2), _row(g3), _row(g4),
                         _row(b1), _row(b2), _row(b3), _row(b4)])             # (8, Cpad)

    args = [x2d.astype(jnp.bfloat16),
            w1.astype(jnp.bfloat16), w2.astype(jnp.bfloat16),
            w3.astype(jnp.bfloat16), w4.T.astype(jnp.bfloat16),
            pb_slab]
    out_shape = (1, M) if c4 == 1 else (M, c4)
    # TODO(synk): request single buffering (pl.Buffered(1)) once verified against
    # the compiled VMEM usage; with grid=(1,) double buffering buys nothing.
    in_specs = [pl.BlockSpec(a.shape, lambda i: (0, 0)) for a in args]

    return pl.pallas_call(
        _make_resident_kernel(M, c_dims),
        out_shape=jax.ShapeDtypeStruct(out_shape, jnp.float32),
        grid=(1,),
        in_specs=in_specs,
        out_specs=pl.BlockSpec(out_shape, lambda i: (0, 0)),
        compiler_params=pltpu.CompilerParams(
            dimension_semantics=("arbitrary",),
            vmem_limit_bytes=vmem_limit,
        ),
    )(*args)


# ---------------------------------------------------------------------------
# Path 2: tiled multi-pass pipeline over M (large M / forced).
# ---------------------------------------------------------------------------
def _make_pass_kernel(tm, m_valid, apply_prev, nt_out):
    def body(scale_ref, shift_ref, yin_ref, w_ref, yout_ref, stats_ref):
        h = yin_ref[...].astype(jnp.float32)                                  # (tm, cin)
        if apply_prev:
            # Previous block's folded BN + ReLU fused into this block's matmul.
            h = jnp.maximum(h * scale_ref[...] + shift_ref[...], 0.0)
        # Zero rows past the real M so this block's batch statistics ignore any
        # padding introduced by the tile size.
        row = pl.program_id(0) * tm + jax.lax.broadcasted_iota(jnp.int32, (tm, 1), 0)
        h = jnp.where(row < m_valid, h, 0.0)
        hb = h.astype(jnp.bfloat16)

        if nt_out:
            # Channel-major (1, tm): lane-dense store for out_channels == 1.
            y = jax.lax.dot_general(w_ref[...], hb, (((1,), (1,)), ((), ())),
                                    preferred_element_type=jnp.float32)      # (1, tm)
            s1 = jnp.sum(y, keepdims=True)                                    # (1, 1)
            s2 = jnp.sum(y * y, keepdims=True)
        else:
            y = jnp.dot(hb, w_ref[...], preferred_element_type=jnp.float32)   # (tm, cout)
            ones = jnp.ones((1, tm), jnp.float32)
            s1 = jnp.dot(ones, y, preferred_element_type=jnp.float32)         # (1, cout)
            s2 = jnp.dot(ones, y * y, preferred_element_type=jnp.float32)

        yout_ref[...] = y
        stats_ref[0:1, 0:1, :] = s1[None]
        stats_ref[0:1, 1:2, :] = s2[None]

    if apply_prev:
        return body
    return lambda yin_ref, w_ref, yout_ref, stats_ref: body(
        None, None, yin_ref, w_ref, yout_ref, stats_ref)


def _run_block_pass(yin, w, prev_scale, prev_shift, *, tm, m_valid, nt_out, vmem_limit):
    m_pad, cin = yin.shape
    num_tiles = m_pad // tm
    cout = w.shape[0] if nt_out else w.shape[1]
    apply_prev = prev_scale is not None

    in_specs, args = [], []
    if apply_prev:
        in_specs += [pl.BlockSpec((1, cin), lambda i: (0, 0)),
                     pl.BlockSpec((1, cin), lambda i: (0, 0))]
        args += [prev_scale, prev_shift]
    in_specs += [pl.BlockSpec((tm, cin), lambda i: (i, 0)),
                 pl.BlockSpec(w.shape, lambda i: (0, 0))]
    args += [yin, w]

    if nt_out:
        y_shape, y_spec = (cout, m_pad), pl.BlockSpec((cout, tm), lambda i: (0, i))
    else:
        y_shape, y_spec = (m_pad, cout), pl.BlockSpec((tm, cout), lambda i: (i, 0))

    y, stats = pl.pallas_call(
        _make_pass_kernel(tm, m_valid, apply_prev, nt_out),
        out_shape=(jax.ShapeDtypeStruct(y_shape, jnp.float32),
                   jax.ShapeDtypeStruct((num_tiles, 2, cout), jnp.float32)),
        grid=(num_tiles,),
        in_specs=in_specs,
        out_specs=(y_spec, pl.BlockSpec((1, 2, cout), lambda i: (i, 0, 0))),
        compiler_params=pltpu.CompilerParams(
            # Per-tile partial sums are independent, so the M axis can be split
            # across v7x's two TensorCores; the tiny cross-tile combine happens
            # outside in _fold_bn.
            dimension_semantics=("parallel",),
            vmem_limit_bytes=vmem_limit,
        ),
    )(*args)
    return y, stats


def _fold_bn(stats, gamma, beta, m):
    """Combine per-tile [sum, sumsq] and fold BN into per-channel scale/shift."""
    s = jnp.sum(stats, axis=0)                       # (2, C)
    mean = s[0] / m
    var = s[1] / m - mean * mean                     # biased variance
    scale = gamma * jax.lax.rsqrt(var + BN_EPS)
    shift = beta - mean * scale
    return scale.reshape(1, -1), shift.reshape(1, -1)


def _tiled_forward(x2d, params, M, tm, vmem_limit):
    (w1, g1, b1), (w2, g2, b2), (w3, g3, b3), (w4, g4, b4) = params
    c4 = w4.shape[1]

    # Tile must be a multiple of 128 so the lane-dense (1, M) final output block
    # is an unmasked store; larger tiles also amortize per-grid-step overhead.
    tm = max(128, (tm // 128) * 128)
    m_pad = ((M + tm - 1) // tm) * tm
    if m_pad != M:
        x2d = jnp.pad(x2d, ((0, m_pad - M), (0, 0)))

    y = x2d.astype(jnp.bfloat16)
    scale = shift = None
    for w, g, b in ((w1, g1, b1), (w2, g2, b2), (w3, g3, b3)):
        y, stats = _run_block_pass(y, w.astype(jnp.bfloat16), scale, shift,
                                   tm=tm, m_valid=M, nt_out=False,
                                   vmem_limit=vmem_limit)
        scale, shift = _fold_bn(stats, g, b, M)

    if c4 == 1:
        y4, stats4 = _run_block_pass(y, w4.T.astype(jnp.bfloat16), scale, shift,
                                     tm=tm, m_valid=M, nt_out=True,
                                     vmem_limit=vmem_limit)
        scale4, shift4 = _fold_bn(stats4, g4, b4, M)
        out = jnp.maximum(y4 * scale4 + shift4, 0.0)    # (1, m_pad) — trivial XLA pass
        return out[:, :M]
    # TODO(synk): lane-dense (c4, M) orientation for general out_channels.
    y4, stats4 = _run_block_pass(y, w4.astype(jnp.bfloat16), scale, shift,
                                 tm=tm, m_valid=M, nt_out=False,
                                 vmem_limit=vmem_limit)
    scale4, shift4 = _fold_bn(stats4, g4, b4, M)
    return jnp.maximum(y4 * scale4 + shift4, 0.0)[:M]


# ---------------------------------------------------------------------------
# Parameters, wrapper, reference.
# ---------------------------------------------------------------------------
def init_relationnet_params(key, in_channels, hid_channels, out_channels):
    """Per block: conv weight as a (cin, cout) matmul matrix, BN gamma, BN beta."""
    dims = [in_channels, hid_channels * 4, hid_channels * 2, hid_channels, out_channels]
    params = []
    for i in range(4):
        cin, cout = dims[i], dims[i + 1]
        key, kw = jax.random.split(key)
        scale = 1.0 / math.sqrt(cin)
        w = jax.random.uniform(kw, (cin, cout), jnp.float32, -scale, scale)
        gamma = jnp.ones((cout,), jnp.float32)   # PyTorch BN default init
        beta = jnp.zeros((cout,), jnp.float32)
        params.append((w, gamma, beta))
    return params


def _resident_footprint_bytes(M, c_dims):
    C, c1, c2, c3, c4 = c_dims
    act = 2 * M * C + sum(6 * M * c for c in (c1, c2, c3, c4))   # bf16 h + f32 y per block
    par = 2 * (C * c1 + c1 * c2 + c2 * c3 + c3 * c4) + 4 * 8 * 128
    return act + par


@functools.partial(jax.jit, static_argnames=("force_tiled", "tile_m"))
def relationnet_forward(x_nchw, params, force_tiled=False, tile_m=512):
    """x_nchw: (N, C, H, W) float32.  params: list of 4 (w, gamma, beta) tuples."""
    N, C, H, W = x_nchw.shape
    M = N * H * W
    c1, c2, c3, c4 = (p[0].shape[1] for p in params)
    c_dims = (C, c1, c2, c3, c4)
    vmem_limit = _vmem_budget_bytes()

    # 1x1 conv == per-pixel matmul over channels: flatten to (M, C) tokens.
    # Materialized by XLA as a contiguous slab so the kernel's HBM DMA is
    # lane-contiguous (allow_input_fusion deliberately not used here).
    x2d = jnp.transpose(x_nchw, (0, 2, 3, 1)).reshape(M, C)

    use_tiled = force_tiled or (_resident_footprint_bytes(M, c_dims) > vmem_limit // 2)
    if use_tiled:
        out = _tiled_forward(x2d, params, M, tile_m, vmem_limit)
    else:
        out = _resident_forward(x2d, params, M, c_dims, vmem_limit)

    # Mirror the module's `x.squeeze()` applied to the (N, c4, H, W) conv output.
    if c4 == 1:
        y = out.reshape(N, 1, H, W)
    else:
        y = out.reshape(N, H, W, c4).transpose(0, 3, 1, 2)
    return jnp.squeeze(y)


def relationnet_reference(x_nchw, params):
    """Pure-JAX f32 reference (two-pass BN formulation) for a sanity check."""
    N, C, H, W = x_nchw.shape
    h = jnp.transpose(x_nchw, (0, 2, 3, 1)).reshape(N * H * W, C)
    for (w, gamma, beta) in params:
        y = h @ w
        mean = jnp.mean(y, axis=0, keepdims=True)
        var = jnp.mean((y - mean) ** 2, axis=0, keepdims=True)
        h = jnp.maximum((y - mean) * jax.lax.rsqrt(var + BN_EPS) * gamma + beta, 0.0)
    c4 = params[-1][0].shape[1]
    y = h.reshape(N, H, W, c4).transpose(0, 3, 1, 2)
    return jnp.squeeze(y)


if __name__ == "__main__":
    key = jax.random.PRNGKey(0)
    k_x1, k_x2, k_p = jax.random.split(key, 3)

    C_IN, HID, C_OUT = 64, 16, 1
    params = init_relationnet_params(k_p, C_IN, HID, C_OUT)

    # 1) Small input -> fully-resident single-call kernel.
    x_small = jax.random.normal(k_x1, (2, C_IN, 8, 8), dtype=jnp.float32)
    out_small = relationnet_forward(x_small, params)
    jax.block_until_ready(out_small)
    assert out_small.shape == (2, 8, 8), out_small.shape
    assert bool(jnp.all(jnp.isfinite(out_small)))
    ref_small = relationnet_reference(x_small, params)
    assert jnp.allclose(out_small, ref_small, atol=5e-2, rtol=5e-2), \
        float(jnp.max(jnp.abs(out_small - ref_small)))

    # 2) Larger input, forced through the tiled multi-pass path (4 M-tiles).
    x_big = jax.random.normal(k_x2, (2, C_IN, 16, 16), dtype=jnp.float32)
    out_big = relationnet_forward(x_big, params, force_tiled=True, tile_m=128)
    jax.block_until_ready(out_big)
    assert out_big.shape == (2, 16, 16), out_big.shape
    assert bool(jnp.all(jnp.isfinite(out_big)))
    ref_big = relationnet_reference(x_big, params)
    assert jnp.allclose(out_big, ref_big, atol=5e-2, rtol=5e-2), \
        float(jnp.max(jnp.abs(out_big - ref_big)))

    print("KERNEL_OK")
</pallas_src>

<mosaic_0001>
module attributes {stable_mosaic.version = 11 : i64} {
  func.func @kernel(%arg0: i32, %arg1: memref<128x64xbf16, #tpu.memory_space<vmem>>, %arg2: memref<64x64xbf16, #tpu.memory_space<vmem>>, %arg3: memref<64x32xbf16, #tpu.memory_space<vmem>>, %arg4: memref<32x16xbf16, #tpu.memory_space<vmem>>, %arg5: memref<1x16xbf16, #tpu.memory_space<vmem>>, %arg6: memref<8x128xf32, #tpu.memory_space<vmem>>, %arg7: memref<1x128xf32, #tpu.memory_space<vmem>>) attributes {dimension_semantics = [#tpu.dimension_semantics<arbitrary>], iteration_bounds = array<i64: 1>, scalar_prefetch = 0 : i64, scratch_operands = 0 : i64, tpu.core_type = #tpu.core_type<tc>, window_params = [{pipeline_mode = #tpu.pipeline_mode<synchronous>, transform_indices = @transform_0, window_bounds = array<i64: 128, 64>}, {pipeline_mode = #tpu.pipeline_mode<synchronous>, transform_indices = @transform_1, window_bounds = array<i64: 64, 64>}, {pipeline_mode = #tpu.pipeline_mode<synchronous>, transform_indices = @transform_2, window_bounds = array<i64: 64, 32>}, {pipeline_mode = #tpu.pipeline_mode<synchronous>, transform_indices = @transform_3, window_bounds = array<i64: 32, 16>}, {pipeline_mode = #tpu.pipeline_mode<synchronous>, transform_indices = @transform_4, window_bounds = array<i64: 1, 16>}, {pipeline_mode = #tpu.pipeline_mode<synchronous>, transform_indices = @transform_5, window_bounds = array<i64: 8, 128>}, {pipeline_mode = #tpu.pipeline_mode<synchronous>, transform_indices = @transform_6, window_bounds = array<i64: 1, 128>}]} {
    %cst = arith.constant 1.000000e+00 : f32
    %0 = vector.broadcast %cst : f32 to vector<1x128xf32>
    %c0 = arith.constant 0 : index
    %c0_0 = arith.constant 0 : index
    %1 = vector.load %arg1[%c0, %c0_0] : memref<128x64xbf16, #tpu.memory_space<vmem>>, vector<128x64xbf16>
    %c0_1 = arith.constant 0 : index
    %c0_2 = arith.constant 0 : index
    %2 = vector.load %arg2[%c0_1, %c0_2] : memref<64x64xbf16, #tpu.memory_space<vmem>>, vector<64x64xbf16>
    %cst_3 = arith.constant dense<0.000000e+00> : vector<128x64xf32>
    %3 = tpu.matmul %1, %2, %cst_3 {dimension_numbers = #tpu.dot_dimension_numbers<[1], [0], [0], [1], [0, 0, 1, 1], [], []>} : vector<128x64xbf16>, vector<64x64xbf16>, vector<128x64xf32> -> vector<128x64xf32>
    %c0_4 = arith.constant 0 : index
    %c0_5 = arith.constant 0 : index
    %4 = vector.load %arg6[%c0_4, %c0_5] : memref<8x128xf32, #tpu.memory_space<vmem>>, vector<1x64xf32>
    %c4 = arith.constant 4 : index
    %c0_6 = arith.constant 0 : index
    %5 = vector.load %arg6[%c4, %c0_6] : memref<8x128xf32, #tpu.memory_space<vmem>>, vector<1x64xf32>
    %cst_7 = arith.constant dense<0.000000e+00> : vector<1x64xf32>
    %6 = tpu.matmul %0, %3, %cst_7 {dimension_numbers = #tpu.dot_dimension_numbers<[1], [0], [0], [1], [0, 0, 1, 1], [], []>} : vector<1x128xf32>, vector<128x64xf32>, vector<1x64xf32> -> vector<1x64xf32>
    %7 = arith.mulf %3, %3 : vector<128x64xf32>
    %cst_8 = arith.constant dense<0.000000e+00> : vector<1x64xf32>
    %8 = tpu.matmul %0, %7, %cst_8 {dimension_numbers = #tpu.dot_dimension_numbers<[1], [0], [0], [1], [0, 0, 1, 1], [], []>} : vector<1x128xf32>, vector<128x64xf32>, vector<1x64xf32> -> vector<1x64xf32>
    %cst_9 = arith.constant 7.812500e-03 : f32
    %9 = vector.broadcast %cst_9 : f32 to vector<1x64xf32>
    %10 = arith.mulf %6, %9 : vector<1x64xf32>
    %cst_10 = arith.constant 7.812500e-03 : f32
    %11 = vector.broadcast %cst_10 : f32 to vector<1x64xf32>
    %12 = arith.mulf %8, %11 : vector<1x64xf32>
    %13 = arith.mulf %10, %10 : vector<1x64xf32>
    %14 = arith.subf %12, %13 : vector<1x64xf32>
    %cst_11 = arith.constant 9.99999974E-6 : f32
    %15 = vector.broadcast %cst_11 : f32 to vector<1x64xf32>
    %16 = arith.addf %14, %15 : vector<1x64xf32>
    %17 = math.rsqrt %16 : vector<1x64xf32>
    %18 = arith.mulf %4, %17 : vector<1x64xf32>
    %19 = arith.mulf %10, %18 : vector<1x64xf32>
    %20 = arith.subf %5, %19 : vector<1x64xf32>
    %21 = vector.broadcast %18 : vector<1x64xf32> to vector<128x64xf32>
    %22 = arith.mulf %3, %21 : vector<128x64xf32>
    %23 = vector.broadcast %20 : vector<1x64xf32> to vector<128x64xf32>
    %24 = arith.addf %22, %23 : vector<128x64xf32>
    %cst_12 = arith.constant 0.000000e+00 : f32
    %25 = vector.broadcast %cst_12 : f32 to vector<128x64xf32>
    %26 = arith.maximumf %24, %25 : vector<128x64xf32>
    %27 = arith.truncf %26 : vector<128x64xf32> to vector<128x64xbf16>
    %c0_13 = arith.constant 0 : index
    %c0_14 = arith.constant 0 : index
    %28 = vector.load %arg3[%c0_13, %c0_14] : memref<64x32xbf16, #tpu.memory_space<vmem>>, vector<64x32xbf16>
    %cst_15 = arith.constant dense<0.000000e+00> : vector<128x32xf32>
    %29 = tpu.matmul %27, %28, %cst_15 {dimension_numbers = #tpu.dot_dimension_numbers<[1], [0], [0], [1], [0, 0, 1, 1], [], []>} : vector<128x64xbf16>, vector<64x32xbf16>, vector<128x32xf32> -> vector<128x32xf32>
    %c1 = arith.constant 1 : index
    %c0_16 = arith.constant 0 : index
    %30 = vector.load %arg6[%c1, %c0_16] : memref<8x128xf32, #tpu.memory_space<vmem>>, vector<1x32xf32>
    %c5 = arith.constant 5 : index
    %c0_17 = arith.constant 0 : index
    %31 = vector.load %arg6[%c5, %c0_17] : memref<8x128xf32, #tpu.memory_space<vmem>>, vector<1x32xf32>
    %cst_18 = arith.constant dense<0.000000e+00> : vector<1x32xf32>
    %32 = tpu.matmul %0, %29, %cst_18 {dimension_numbers = #tpu.dot_dimension_numbers<[1], [0], [0], [1], [0, 0, 1, 1], [], []>} : vector<1x128xf32>, vector<128x32xf32>, vector<1x32xf32> -> vector<1x32xf32>
    %33 = arith.mulf %29, %29 : vector<128x32xf32>
    %cst_19 = arith.constant dense<0.000000e+00> : vector<1x32xf32>
    %34 = tpu.matmul %0, %33, %cst_19 {dimension_numbers = #tpu.dot_dimension_numbers<[1], [0], [0], [1], [0, 0, 1, 1], [], []>} : vector<1x128xf32>, vector<128x32xf32>, vector<1x32xf32> -> vector<1x32xf32>
    %cst_20 = arith.constant 7.812500e-03 : f32
    %35 = vector.broadcast %cst_20 : f32 to vector<1x32xf32>
    %36 = arith.mulf %32, %35 : vector<1x32xf32>
    %cst_21 = arith.constant 7.812500e-03 : f32
    %37 = vector.broadcast %cst_21 : f32 to vector<1x32xf32>
    %38 = arith.mulf %34, %37 : vector<1x32xf32>
    %39 = arith.mulf %36, %36 : vector<1x32xf32>
    %40 = arith.subf %38, %39 : vector<1x32xf32>
    %cst_22 = arith.constant 9.99999974E-6 : f32
    %41 = vector.broadcast %cst_22 : f32 to vector<1x32xf32>
    %42 = arith.addf %40, %41 : vector<1x32xf32>
    %43 = math.rsqrt %42 : vector<1x32xf32>
    %44 = arith.mulf %30, %43 : vector<1x32xf32>
    %45 = arith.mulf %36, %44 : vector<1x32xf32>
    %46 = arith.subf %31, %45 : vector<1x32xf32>
    %47 = vector.broadcast %44 : vector<1x32xf32> to vector<128x32xf32>
    %48 = arith.mulf %29, %47 : vector<128x32xf32>
    %49 = vector.broadcast %46 : vector<1x32xf32> to vector<128x32xf32>
    %50 = arith.addf %48, %49 : vector<128x32xf32>
    %cst_23 = arith.constant 0.000000e+00 : f32
    %51 = vector.broadcast %cst_23 : f32 to vector<128x32xf32>
    %52 = arith.maximumf %50, %51 : vector<128x32xf32>
    %53 = arith.truncf %52 : vector<128x32xf32> to vector<128x32xbf16>
    %c0_24 = arith.constant 0 : index
    %c0_25 = arith.constant 0 : index
    %54 = vector.load %arg4[%c0_24, %c0_25] : memref<32x16xbf16, #tpu.memory_space<vmem>>, vector<32x16xbf16>
    %cst_26 = arith.constant dense<0.000000e+00> : vector<128x16xf32>
    %55 = tpu.matmul %53, %54, %cst_26 {dimension_numbers = #tpu.dot_dimension_numbers<[1], [0], [0], [1], [0, 0, 1, 1], [], []>} : vector<128x32xbf16>, vector<32x16xbf16>, vector<128x16xf32> -> vector<128x16xf32>
    %c2 = arith.constant 2 : index
    %c0_27 = arith.constant 0 : index
    %56 = vector.load %arg6[%c2, %c0_27] : memref<8x128xf32, #tpu.memory_space<vmem>>, vector<1x16xf32>
    %c6 = arith.constant 6 : index
    %c0_28 = arith.constant 0 : index
    %57 = vector.load %arg6[%c6, %c0_28] : memref<8x128xf32, #tpu.memory_space<vmem>>, vector<1x16xf32>
    %cst_29 = arith.constant dense<0.000000e+00> : vector<1x16xf32>
    %58 = tpu.matmul %0, %55, %cst_29 {dimension_numbers = #tpu.dot_dimension_numbers<[1], [0], [0], [1], [0, 0, 1, 1], [], []>} : vector<1x128xf32>, vector<128x16xf32>, vector<1x16xf32> -> vector<1x16xf32>
    %59 = arith.mulf %55, %55 : vector<128x16xf32>
    %cst_30 = arith.constant dense<0.000000e+00> : vector<1x16xf32>
    %60 = tpu.matmul %0, %59, %cst_30 {dimension_numbers = #tpu.dot_dimension_numbers<[1], [0], [0], [1], [0, 0, 1, 1], [], []>} : vector<1x128xf32>, vector<128x16xf32>, vector<1x16xf32> -> vector<1x16xf32>
    %cst_31 = arith.constant 7.812500e-03 : f32
    %61 = vector.broadcast %cst_31 : f32 to vector<1x16xf32>
    %62 = arith.mulf %58, %61 : vector<1x16xf32>
    %cst_32 = arith.constant 7.812500e-03 : f32
    %63 = vector.broadcast %cst_32 : f32 to vector<1x16xf32>
    %64 = arith.mulf %60, %63 : vector<1x16xf32>
    %65 = arith.mulf %62, %62 : vector<1x16xf32>
    %66 = arith.subf %64, %65 : vector<1x16xf32>
    %cst_33 = arith.constant 9.99999974E-6 : f32
    %67 = vector.broadcast %cst_33 : f32 to vector<1x16xf32>
    %68 = arith.addf %66, %67 : vector<1x16xf32>
    %69 = math.rsqrt %68 : vector<1x16xf32>
    %70 = arith.mulf %56, %69 : vector<1x16xf32>
    %71 = arith.mulf %62, %70 : vector<1x16xf32>
    %72 = arith.subf %57, %71 : vector<1x16xf32>
    %73 = vector.broadcast %70 : vector<1x16xf32> to vector<128x16xf32>
    %74 = arith.mulf %55, %73 : vector<128x16xf32>
    %75 = vector.broadcast %72 : vector<1x16xf32> to vector<128x16xf32>
    %76 = arith.addf %74, %75 : vector<128x16xf32>
    %cst_34 = arith.constant 0.000000e+00 : f32
    %77 = vector.broadcast %cst_34 : f32 to vector<128x16xf32>
    %78 = arith.maximumf %76, %77 : vector<128x16xf32>
    %79 = arith.truncf %78 : vector<128x16xf32> to vector<128x16xbf16>
    %c0_35 = arith.constant 0 : index
    %c0_36 = arith.constant 0 : index
    %80 = vector.load %arg5[%c0_35, %c0_36] : memref<1x16xbf16, #tpu.memory_space<vmem>>, vector<1x16xbf16>
    %cst_37 = arith.constant dense<0.000000e+00> : vector<1x128xf32>
    %81 = tpu.matmul %80, %79, %cst_37 {dimension_numbers = #tpu.dot_dimension_numbers<[1], [1], [0], [0], [0, 0, 1, 0], [], []>} : vector<1x16xbf16>, vector<128x16xbf16>, vector<1x128xf32> -> vector<1x128xf32>
    %82 = vector.shape_cast %81 : vector<1x128xf32> to vector<1x1x128xf32>
    %cst_38 = arith.constant dense<0.000000e+00> : vector<1xf32>
    %83 = vector.multi_reduction <add>, %82, %cst_38 [1, 2] : vector<1x1x128xf32> to vector<1xf32>
    %84 = vector.shape_cast %83 : vector<1xf32> to vector<1x1x1xf32>
    %85 = vector.extract %84[0, 0, 0] : f32 from vector<1x1x1xf32>
    %86 = vector.broadcast %85 : f32 to vector<1x1xf32>
    %87 = arith.mulf %81, %81 : vector<1x128xf32>
    %88 = vector.shape_cast %87 : vector<1x128xf32> to vector<1x1x128xf32>
    %cst_39 = arith.constant dense<0.000000e+00> : vector<1xf32>
    %89 = vector.multi_reduction <add>, %88, %cst_39 [1, 2] : vector<1x1x128xf32> to vector<1xf32>
    %90 = vector.shape_cast %89 : vector<1xf32> to vector<1x1x1xf32>
    %91 = vector.extract %90[0, 0, 0] : f32 from vector<1x1x1xf32>
    %92 = vector.broadcast %91 : f32 to vector<1x1xf32>
    %cst_40 = arith.constant 7.812500e-03 : f32
    %93 = vector.broadcast %cst_40 : f32 to vector<1x1xf32>
    %94 = arith.mulf %86, %93 : vector<1x1xf32>
    %cst_41 = arith.constant 7.812500e-03 : f32
    %95 = vector.broadcast %cst_41 : f32 to vector<1x1xf32>
    %96 = arith.mulf %92, %95 : vector<1x1xf32>
    %97 = arith.mulf %94, %94 : vector<1x1xf32>
    %98 = arith.subf %96, %97 : vector<1x1xf32>
    %c3 = arith.constant 3 : index
    %c0_42 = arith.constant 0 : index
    %99 = vector.load %arg6[%c3, %c0_42] : memref<8x128xf32, #tpu.memory_space<vmem>>, vector<1x1xf32>
    %cst_43 = arith.constant 9.99999974E-6 : f32
    %100 = vector.broadcast %cst_43 : f32 to vector<1x1xf32>
    %101 = arith.addf %98, %100 : vector<1x1xf32>
    %102 = math.rsqrt %101 : vector<1x1xf32>
    %103 = arith.mulf %99, %102 : vector<1x1xf32>
    %c7 = arith.constant 7 : index
    %c0_44 = arith.constant 0 : index
    %104 = vector.load %arg6[%c7, %c0_44] : memref<8x128xf32, #tpu.memory_space<vmem>>, vector<1x1xf32>
    %105 = arith.mulf %94, %103 : vector<1x1xf32>
    %106 = arith.subf %104, %105 : vector<1x1xf32>
    %107 = vector.broadcast %103 : vector<1x1xf32> to vector<1x128xf32>
    %108 = arith.mulf %81, %107 : vector<1x128xf32>
    %109 = vector.broadcast %106 : vector<1x1xf32> to vector<1x128xf32>
    %110 = arith.addf %108, %109 : vector<1x128xf32>
    %cst_45 = arith.constant 0.000000e+00 : f32
    %111 = vector.broadcast %cst_45 : f32 to vector<1x128xf32>
    %112 = arith.maximumf %110, %111 : vector<1x128xf32>
    %c0_46 = arith.constant 0 : index
    %c0_47 = arith.constant 0 : index
    %113 = vector.load %arg7[%c0_46, %c0_47] : memref<1x128xf32, #tpu.memory_space<vmem>>, vector<1x128xf32>
    tpu.vector_store %arg7[%c0_46, %c0_47], %112 {strides = array<i32>} : memref<1x128xf32, #tpu.memory_space<vmem>>, vector<1x128xf32>,
    return
  }
  func.func @transform_0(%arg0: i32) -> (i32, i32) {
    %c0_i32 = arith.constant 0 : i32
    %c0_i32_0 = arith.constant 0 : i32
    %c0_i32_1 = arith.constant 0 : i32
    return %c0_i32, %c0_i32_0 : i32, i32
  }
  func.func @transform_1(%arg0: i32) -> (i32, i32) {
    %c0_i32 = arith.constant 0 : i32
    %c0_i32_0 = arith.constant 0 : i32
    %c0_i32_1 = arith.constant 0 : i32
    return %c0_i32, %c0_i32_0 : i32, i32
  }
  func.func @transform_2(%arg0: i32) -> (i32, i32) {
    %c0_i32 = arith.constant 0 : i32
    %c0_i32_0 = arith.constant 0 : i32
    %c0_i32_1 = arith.constant 0 : i32
    return %c0_i32, %c0_i32_0 : i32, i32
  }
  func.func @transform_3(%arg0: i32) -> (i32, i32) {
    %c0_i32 = arith.constant 0 : i32
    %c0_i32_0 = arith.constant 0 : i32
    %c0_i32_1 = arith.constant 0 : i32
    return %c0_i32, %c0_i32_0 : i32, i32
  }
  func.func @transform_4(%arg0: i32) -> (i32, i32) {
    %c0_i32 = arith.constant 0 : i32
    %c0_i32_0 = arith.constant 0 : i32
    %c0_i32_1 = arith.constant 0 : i32
    return %c0_i32, %c0_i32_0 : i32, i32
  }
  func.func @transform_5(%arg0: i32) -> (i32, i32) {
    %c0_i32 = arith.constant 0 : i32
    %c0_i32_0 = arith.constant 0 : i32
    %c0_i32_1 = arith.constant 0 : i32
    return %c0_i32, %c0_i32_0 : i32, i32
  }
  func.func @transform_6(%arg0: i32) -> (i32, i32) {
    %c0_i32 = arith.constant 0 : i32
    %c0_i32_0 = arith.constant 0 : i32
    %c0_i32_1 = arith.constant 0 : i32
    return %c0_i32, %c0_i32_0 : i32, i32
  }
}

</mosaic_0001>

<llo_original>
// kernel: relationnet_forward.1
$region0: #{relationnet_forward.1}
  #allocation0 [shape = 'u32[]', space=smem, size = 0x4, offset = 0x4, fixed_abs, tag = 'smem constant byte address 0x4 - core index']
  #allocation1 [shape = 'u32[144,128]{1,0:T(1,128)}', space=vmem, size = 0x12000, scoped, tag = 'internal scratch']
  %s0 = inlined_call_operand.hbm [shape: bf16[128,64], index: 0, kind: input, shape index: {}]
  %s1 = inlined_call_operand.hbm [shape: bf16[64,64], index: 1, kind: input, shape index: {}]
  %s2 = inlined_call_operand.hbm [shape: bf16[64,32], index: 2, kind: input, shape index: {}]
  %s3 = inlined_call_operand.hbm [shape: bf16[32,16], index: 3, kind: input, shape index: {}]
  %s4 = inlined_call_operand.hbm [shape: bf16[1,16], index: 4, kind: input, shape index: {}]
  %s5 = inlined_call_operand.hbm [shape: f32[8,128], index: 5, kind: input, shape index: {}]
  %s6 = inlined_call_operand.hbm [shape: f32[1,128], index: 6, kind: output, shape index: {}]
  %s7 = sld [smem:[#allocation0]]
  $region58: #{relationnet_forward.1} parent=0
    _
  %s9 = ssub.s32 1, %s7
  %s10 = scalar_select 0, %s9, %s7
  $region1: #{relationnet_forward.1} parent=0
    #allocation2 [shape = 'u8[32768]{0}', space=vmem, size = 0x8000, scoped, tag = 'input window, operand 0, single buffered']
    #allocation3 [shape = 's32[1]{0}', space=sflag, size = 0x4, scoped, tag = 'scoped memory for relationnet_forward.1']
    #allocation4 [shape = 's32[1]{0}', space=sflag, size = 0x4, scoped, tag = 'scoped memory for relationnet_forward.1']
    #allocation5 [shape = 'u8[16384]{0}', space=vmem, size = 0x4000, scoped, tag = 'input window, operand 1, single buffered']
    #allocation6 [shape = 's32[1]{0}', space=sflag, size = 0x4, scoped, tag = 'scoped memory for relationnet_forward.1']
    #allocation7 [shape = 'u8[16384]{0}', space=vmem, size = 0x4000, scoped, tag = 'input window, operand 2, single buffered']
    #allocation8 [shape = 'u8[8192]{0}', space=vmem, size = 0x2000, scoped, tag = 'input window, operand 3, single buffered']
    #allocation9 [shape = 's32[1]{0}', space=sflag, size = 0x4, scoped, tag = 'scoped memory for relationnet_forward.1']
    #allocation10 [shape = 'u8[512]{0}', space=vmem, size = 0x400, scoped, tag = 'input window, operand 4, single buffered']
    #allocation11 [shape = 'u8[4096]{0}', space=vmem, size = 0x1000, scoped, tag = 'input window, operand 5, single buffered']
    #allocation12 [shape = 's32[1]{0}', space=sflag, size = 0x4, scoped, tag = 'scoped memory for relationnet_forward.1']
    #allocation13 [shape = 'u8[512]{0}', space=vmem, size = 0x400, scoped, tag = 'output window, operand 0, single buffered']
    %11 = vsyncpa [#allocation3], 0
    %12 = vsyncpa [#allocation6], 0
    %13 = vsyncpa [#allocation9], 0
    %14 = vsyncpa [#allocation12], 0
    %15 = vsyncpa [#allocation4], 0
    // Predicated region
    $region2: #{relationnet_forward.1} parent=1 // pred_check
      _
    $region3: #{relationnet_forward.1} parent=1 // pred_check_branch
      %17 = sbr.rel (0) target = $region5
    $region4: #{relationnet_forward.1} parent=1 // pred_region
      %s19 = ssub.s32 1024, 1024
      %20 = vsyncadd [#allocation3], %s19
      %s21 = sshll.u32 [#allocation2], 4
      %s22 = int_to_ptr.vmem [resolvable:$true] %s21
      %27 = dma.hbm_to_vmem [thread:$0]  %s0, 1024, %s22, [#allocation3], 64, 64, 4
    $region5: #{relationnet_forward.1} parent=1 // pred_fallthru
      _
    // Predicated region
    $region6: #{relationnet_forward.1} parent=1 // pred_check
      _
    $region7: #{relationnet_forward.1} parent=1 // pred_check_branch
      %29 = sbr.rel (0) target = $region9
    $region8: #{relationnet_forward.1} parent=1 // pred_region
      %s31 = ssub.s32 512, 512
      %32 = vsyncadd [#allocation6], %s31
      %s33 = sshll.u32 [#allocation5], 4
      %s34 = int_to_ptr.vmem [resolvable:$true] %s33
      %39 = dma.hbm_to_vmem [thread:$0]  %s1, 512, %s34, [#allocation6], 64, 64, 4
    $region9: #{relationnet_forward.1} parent=1 // pred_fallthru
      _
    // Predicated region
    $region10: #{relationnet_forward.1} parent=1 // pred_check
      _
    $region11: #{relationnet_forward.1} parent=1 // pred_check_branch
      %41 = sbr.rel (0) target = $region13
    $region12: #{relationnet_forward.1} parent=1 // pred_region
      %s43 = ssub.s32 512, 512
      %44 = vsyncadd [#allocation6], %s43
      %s45 = sshll.u32 [#allocation7], 4
      %s46 = int_to_ptr.vmem [resolvable:$true] %s45
      %51 = dma.hbm_to_vmem [thread:$0]  %s2, 512, %s46, [#allocation6], 64, 64, 4
    $region13: #{relationnet_forward.1} parent=1 // pred_fallthru
      _
    // Predicated region
    $region14: #{relationnet_forward.1} parent=1 // pred_check
      _
    $region15: #{relationnet_forward.1} parent=1 // pred_check_branch
      %53 = sbr.rel (0) target = $region17
    $region16: #{relationnet_forward.1} parent=1 // pred_region
      %s55 = ssub.s32 256, 256
      %56 = vsyncadd [#allocation9], %s55
      %s57 = sshll.u32 [#allocation8], 4
      %s58 = int_to_ptr.vmem [resolvable:$true] %s57
      %63 = dma.hbm_to_vmem [thread:$0]  %s3, 256, %s58, [#allocation9], 64, 64, 4
    $region17: #{relationnet_forward.1} parent=1 // pred_fallthru
      _
    // Predicated region
    $region18: #{relationnet_forward.1} parent=1 // pred_check
      _
    $region19: #{relationnet_forward.1} parent=1 // pred_check_branch
      %65 = sbr.rel (0) target = $region21
    $region20: #{relationnet_forward.1} parent=1 // pred_region
      %s67 = ssub.s32 16, 16
      %68 = vsyncadd [#allocation9], %s67
      %s70 = sshll.u32 [#allocation10], 4
      %s71 = int_to_ptr.vmem [resolvable:$true] %s70
      %73 = dma.hbm_to_vmem [thread:$0]  %s4, 16, %s71, [#allocation9]
    $region21: #{relationnet_forward.1} parent=1 // pred_fallthru
      _
    // Predicated region
    $region22: #{relationnet_forward.1} parent=1 // pred_check
      _
    $region23: #{relationnet_forward.1} parent=1 // pred_check_branch
      %75 = sbr.rel (0) target = $region25
    $region24: #{relationnet_forward.1} parent=1 // pred_region
      %s77 = ssub.s32 128, 128
      %78 = vsyncadd [#allocation12], %s77
      %s80 = sshll.u32 [#allocation11], 4
      %s81 = int_to_ptr.vmem [resolvable:$true] %s80
      %83 = dma.hbm_to_vmem [thread:$0]  %s5, 128, %s81, [#allocation12]
    $region25: #{relationnet_forward.1} parent=1 // pred_fallthru
      _
    // Predicated region
    $region26: #{relationnet_forward.1} parent=1 // pred_check
      _
    $region27: #{relationnet_forward.1} parent=1 // pred_check_branch
      %85 = sbr.rel (0) target = $region29
    $region28: #{relationnet_forward.1} parent=1 // pred_region
      %86 = dma.done [#allocation3], 1024
    $region29: #{relationnet_forward.1} parent=1 // pred_fallthru
      _
    // Predicated region
    $region30: #{relationnet_forward.1} parent=1 // pred_check
      _
    $region31: #{relationnet_forward.1} parent=1 // pred_check_branch
      %88 = sbr.rel (0) target = $region33
    $region32: #{relationnet_forward.1} parent=1 // pred_region
      %89 = dma.done [#allocation6], 512
    $region33: #{relationnet_forward.1} parent=1 // pred_fallthru
      _
    // Predicated region
    $region34: #{relationnet_forward.1} parent=1 // pred_check
      _
    $region35: #{relationnet_forward.1} parent=1 // pred_check_branch
      %91 = sbr.rel (0) target = $region37
    $region36: #{relationnet_forward.1} parent=1 // pred_region
      %92 = dma.done [#allocation6], 512
    $region37: #{relationnet_forward.1} parent=1 // pred_fallthru
      _
    // Predicated region
    $region38: #{relationnet_forward.1} parent=1 // pred_check
      _
    $region39: #{relationnet_forward.1} parent=1 // pred_check_branch
      %94 = sbr.rel (0) target = $region41
    $region40: #{relationnet_forward.1} parent=1 // pred_region
      %95 = dma.done [#allocation9], 256
    $region41: #{relationnet_forward.1} parent=1 // pred_fallthru
      _
    // Predicated region
    $region42: #{relationnet_forward.1} parent=1 // pred_check
      _
    $region43: #{relationnet_forward.1} parent=1 // pred_check_branch
      %97 = sbr.rel (0) target = $region45
    $region44: #{relationnet_forward.1} parent=1 // pred_region
      %98 = dma.done [#allocation9], 16
    $region45: #{relationnet_forward.1} parent=1 // pred_fallthru
      _
    // Predicated region
    $region46: #{relationnet_forward.1} parent=1 // pred_check
      _
    $region47: #{relationnet_forward.1} parent=1 // pred_check_branch
      %100 = sbr.rel (0) target = $region49
    $region48: #{relationnet_forward.1} parent=1 // pred_region
      %101 = dma.done [#allocation12], 128
    $region49: #{relationnet_forward.1} parent=1 // pred_fallthru
      _
    %v103 = vld [vmem:[#allocation2] sm:$0xf]
    %v104 = vld [vmem:[#allocation2 + $0x4] sm:$0xf]
    %v105 = vld [vmem:[#allocation2 + $0x8] sm:$0xf]
    %v106 = vld [vmem:[#allocation2 + $0xc] sm:$0xf]
    %v107 = vld [vmem:[#allocation2 + $0x10] sm:$0xf]
    %v108 = vld [vmem:[#allocation2 + $0x14] sm:$0xf]
    %v109 = vld [vmem:[#allocation2 + $0x18] sm:$0xf]
    %v110 = vld [vmem:[#allocation2 + $0x1c] sm:$0xf]
    %v111 = vld [vmem:[#allocation2 + $0x20] sm:$0xf]
    %v112 = vld [vmem:[#allocation2 + $0x24] sm:$0xf]
    %v113 = vld [vmem:[#allocation2 + $0x28] sm:$0xf]
    %v114 = vld [vmem:[#allocation2 + $0x2c] sm:$0xf]
    %v115 = vld [vmem:[#allocation2 + $0x30] sm:$0xf]
    %v116 = vld [vmem:[#allocation2 + $0x34] sm:$0xf]
    %v117 = vld [vmem:[#allocation2 + $0x38] sm:$0xf]
    %v118 = vld [vmem:[#allocation2 + $0x3c] sm:$0xf]
    %v119 = vld [vmem:[#allocation5] sm:$0xf]
    %v120 = vld [vmem:[#allocation5 + $0x4] sm:$0xf]
    %v121 = vld [vmem:[#allocation5 + $0x8] sm:$0xf]
    %v122 = vld [vmem:[#allocation5 + $0xc] sm:$0xf]
    %v123 = vld [vmem:[#allocation5 + $0x10] sm:$0xf]
    %v124 = vld [vmem:[#allocation5 + $0x14] sm:$0xf]
    %v125 = vld [vmem:[#allocation5 + $0x18] sm:$0xf]
    %v126 = vld [vmem:[#allocation5 + $0x1c] sm:$0xf]
    %v143 = vunpack.c.l.b16 %v103
    %v144 = vunpack.c.l.b16 %v104
    %v145 = vunpack.c.l.b16 %v105
    %v146 = vunpack.c.l.b16 %v106
    %v147 = vunpack.c.l.b16 %v107
    %v148 = vunpack.c.l.b16 %v108
    %v149 = vunpack.c.l.b16 %v109
    %v150 = vunpack.c.l.b16 %v110
    %v151 = vunpack.c.l.b16 %v111
    %v152 = vunpack.c.l.b16 %v112
    %v153 = vunpack.c.l.b16 %v113
    %v154 = vunpack.c.l.b16 %v114
    %v155 = vunpack.c.l.b16 %v115
    %v156 = vunpack.c.l.b16 %v116
    %v157 = vunpack.c.l.b16 %v117
    %v158 = vunpack.c.l.b16 %v118
    %v159 = vpack.c.b16 %v144, %v143
    %v160 = vpack.c.b16 %v146, %v145
    %v161 = vpack.c.b16 %v148, %v147
    %v162 = vpack.c.b16 %v150, %v149
    %v163 = vpack.c.b16 %v152, %v151
    %v164 = vpack.c.b16 %v154, %v153
    %v165 = vpack.c.b16 %v156, %v155
    %v166 = vpack.c.b16 %v158, %v157
    %v175 = vunpack.c.l.b16 %v119
    %v176 = vunpack.c.l.b16 %v120
    %v177 = vunpack.c.l.b16 %v121
    %v178 = vunpack.c.l.b16 %v122
    %v179 = vunpack.c.l.b16 %v123
    %v180 = vunpack.c.l.b16 %v124
    %v181 = vunpack.c.l.b16 %v125
    %v182 = vunpack.c.l.b16 %v126
    %v183 = vpack.c.b16 %v176, %v175
    %v184 = vpack.c.b16 %v178, %v177
    %v185 = vpack.c.b16 %v180, %v179
    %v186 = vpack.c.b16 %v182, %v181
    %vm191 = vcmask 523264
    %v193 = vsel %vm191, %v159, 0
    %v196 = vsel %vm191, %v160, 0
    %v199 = vsel %vm191, %v161, 0
    %v202 = vsel %vm191, %v162, 0
    %v205 = vsel %vm191, %v163, 0
    %v208 = vsel %vm191, %v164, 0
    %v211 = vsel %vm191, %v165, 0
    %v214 = vsel %vm191, %v166, 0
    %216 = vmatprep.subr.bf16.mxu0 0
    %217 = vmatpush1.bf16.msra.mxu0 %v183
    %218 = vmatprep.subr.bf16.mxu0 0
    %219 = vmatpush1.bf16.msra.mxu0 %v184
    %220 = vmatprep.subr.bf16.mxu0 0
    %221 = vmatpush1.bf16.msra.mxu0 %v185
    %222 = vmatprep.subr.bf16.mxu0 0
    %223 = vmatpush1.bf16.msra.mxu0 %v186
    %224 = vmatprep.subr.bf16.mxu0 0
    %225 = vmatpush1.bf16.msra.mxu0 0
    %226 = vmatprep.subr.bf16.mxu0 0
    %227 = vmatpush1.bf16.msra.mxu0 0
    %228 = vmatprep.subr.bf16.mxu0 0
    %229 = vmatpush1.bf16.msra.mxu0 0
    %230 = vmatprep.subr.bf16.mxu0 0
    %231 = vmatpush1.bf16.msra.mxu0 0
    %232 = vmatprep.subr.bf16.mxu0 0
    %233 = vmatpush1.bf16.msra.mxu0 0
    %234 = vmatprep.subr.bf16.mxu0 0
    %235 = vmatpush1.bf16.msra.mxu0 0
    %236 = vmatprep.subr.bf16.mxu0 0
    %237 = vmatpush1.bf16.msra.mxu0 0
    %238 = vmatprep.subr.bf16.mxu0 0
    %239 = vmatpush1.bf16.msra.mxu0 0
    %240 = vmatprep.subr.bf16.mxu0 0
    %241 = vmatpush1.bf16.msra.mxu0 0
    %242 = vmatprep.subr.bf16.mxu0 0
    %243 = vmatpush1.bf16.msra.mxu0 0
    %244 = vmatprep.subr.bf16.mxu0 0
    %245 = vmatpush1.bf16.msra.mxu0 0
    %246 = vmatprep.subr.bf16.mxu0 0
    %247 = vmatpush1.bf16.msra.mxu0 0
    %248 = vmatprep.mubr.bf16.mxu0 0
    %249 = vmatmul.mubr.bf16.gmra.mrb[0].mxu0 %v193
    %v250 = vpop.f32.mrb[0].mxu0
    %v251 = vadd.f32 0.0, %v250
    %v252 = vpop.f32.mrb[0].mxu0
    %v253 = vpop.f32.mrb[0].mxu0
    %v254 = vadd.f32 0.0, %v253
    %v255 = vpop.f32.mrb[0].mxu0
    %256 = vmatprep.mubr.bf16.mxu0 0
    %257 = vmatmul.mubr.bf16.gmra.mrb[0].mxu0 %v196
    %v258 = vpop.f32.mrb[0].mxu0
    %v259 = vadd.f32 0.0, %v258
    %v260 = vpop.f32.mrb[0].mxu0
    %v261 = vpop.f32.mrb[0].mxu0
    %v262 = vadd.f32 0.0, %v261
    %v263 = vpop.f32.mrb[0].mxu0
    %264 = vmatprep.mubr.bf16.mxu0 0
    %265 = vmatmul.mubr.bf16.gmra.mrb[0].mxu0 %v199
    %v266 = vpop.f32.mrb[0].mxu0
    %v267 = vadd.f32 0.0, %v266
    %v268 = vpop.f32.mrb[0].mxu0
    %v269 = vpop.f32.mrb[0].mxu0
    %v270 = vadd.f32 0.0, %v269
    %v271 = vpop.f32.mrb[0].mxu0
    %272 = vmatprep.mubr.bf16.mxu0 0
    %273 = vmatmul.mubr.bf16.gmra.mrb[0].mxu0 %v202
    %v274 = vpop.f32.mrb[0].mxu0
    %v275 = vadd.f32 0.0, %v274
    %v276 = vpop.f32.mrb[0].mxu0
    %v277 = vpop.f32.mrb[0].mxu0
    %v278 = vadd.f32 0.0, %v277
    %v279 = vpop.f32.mrb[0].mxu0
    %280 = vmatprep.mubr.bf16.mxu0 0
    %281 = vmatmul.mubr.bf16.gmra.mrb[0].mxu0 %v205
    %v282 = vpop.f32.mrb[0].mxu0
    %v283 = vadd.f32 0.0, %v282
    %v284 = vpop.f32.mrb[0].mxu0
    %v285 = vpop.f32.mrb[0].mxu0
    %v286 = vadd.f32 0.0, %v285
    %v287 = vpop.f32.mrb[0].mxu0
    %288 = vmatprep.mubr.bf16.mxu0 0
    %289 = vmatmul.mubr.bf16.gmra.mrb[0].mxu0 %v208
    %v290 = vpop.f32.mrb[0].mxu0
    %v291 = vadd.f32 0.0, %v290
    %v292 = vpop.f32.mrb[0].mxu0
    %v293 = vpop.f32.mrb[0].mxu0
    %v294 = vadd.f32 0.0, %v293
    %v295 = vpop.f32.mrb[0].mxu0
    %296 = vmatprep.mubr.bf16.mxu0 0
    %297 = vmatmul.mubr.bf16.gmra.mrb[0].mxu0 %v211
    %v298 = vpop.f32.mrb[0].mxu0
    %v299 = vadd.f32 0.0, %v298
    %v300 = vpop.f32.mrb[0].mxu0
    %v301 = vpop.f32.mrb[0].mxu0
    %v302 = vadd.f32 0.0, %v301
    %v303 = vpop.f32.mrb[0].mxu0
    %304 = vmatprep.mubr.bf16.mxu0 0
    %305 = vmatmul.mubr.bf16.gmra.mrb[0].mxu0 %v214
    %v306 = vpop.f32.mrb[0].mxu0
    %v307 = vadd.f32 0.0, %v306
    %v308 = vpop.f32.mrb[0].mxu0
    %v309 = vpop.f32.mrb[0].mxu0
    %v310 = vadd.f32 0.0, %v309
    %v311 = vpop.f32.mrb[0].mxu0
    %312 = vdwg.mxu0
    %v313 = vld [vmem:[#allocation11] sm:$0x1]
    %v314 = vld [vmem:[#allocation11 + $0x4] sm:$0x1]
    %315 = vmatprep.subr.mxu0 0.0
    %316 = vmatpush1.msra.mxu0 %v251
    %317 = vmatprep.subr.mxu0 0.0
    %318 = vmatpush1.msra.mxu0 %v254
    %319 = vmatprep.subr.mxu0 0.0
    %320 = vmatpush1.msra.mxu0 %v259
    %321 = vmatprep.subr.mxu0 0.0
    %322 = vmatpush1.msra.mxu0 %v262
    %323 = vmatprep.subr.mxu0 0.0
    %324 = vmatpush1.msra.mxu0 %v267
    %325 = vmatprep.subr.mxu0 0.0
    %326 = vmatpush1.msra.mxu0 %v270
    %327 = vmatprep.subr.mxu0 0.0
    %328 = vmatpush1.msra.mxu0 %v275
    %329 = vmatprep.subr.mxu0 0.0
    %330 = vmatpush1.msra.mxu0 %v278
    %331 = vmatprep.subr.mxu0 0.0
    %332 = vmatpush1.msra.mxu0 %v283
    %333 = vmatprep.subr.mxu0 0.0
    %334 = vmatpush1.msra.mxu0 %v286
    %335 = vmatprep.subr.mxu0 0.0
    %336 = vmatpush1.msra.mxu0 %v291
    %337 = vmatprep.subr.mxu0 0.0
    %338 = vmatpush1.msra.mxu0 %v294
    %339 = vmatprep.subr.mxu0 0.0
    %340 = vmatpush1.msra.mxu0 %v299
    %341 = vmatprep.subr.mxu0 0.0
    %342 = vmatpush1.msra.mxu0 %v302
    %343 = vmatprep.subr.mxu0 0.0
    %344 = vmatpush1.msra.mxu0 %v307
    %345 = vmatprep.subr.mxu0 0.0
    %346 = vmatpush1.msra.mxu0 %v310
    %347 = vmatprep.subr.mxu0 0.0
    %348 = vmatpush1.msra.mxu0 0.0
    %349 = vmatprep.subr.mxu0 0.0
    %350 = vmatpush1.msra.mxu0 0.0
    %351 = vmatprep.subr.mxu0 0.0
    %352 = vmatpush1.msra.mxu0 0.0
    %353 = vmatprep.subr.mxu0 0.0
    %354 = vmatpush1.msra.mxu0 0.0
    %355 = vmatprep.subr.mxu0 0.0
    %356 = vmatpush1.msra.mxu0 0.0
    %357 = vmatprep.subr.mxu0 0.0
    %358 = vmatpush1.msra.mxu0 0.0
    %359 = vmatprep.subr.mxu0 0.0
    %360 = vmatpush1.msra.mxu0 0.0
    %361 = vmatprep.subr.mxu0 0.0
    %362 = vmatpush1.msra.mxu0 0.0
    %363 = vmatprep.subr.mxu0 0.0
    %364 = vmatpush1.msra.mxu0 0.0
    %365 = vmatprep.subr.mxu0 0.0
    %366 = vmatpush1.msra.mxu0 0.0
    %367 = vmatprep.subr.mxu0 0.0
    %368 = vmatpush1.msra.mxu0 0.0
    %369 = vmatprep.subr.mxu0 0.0
    %370 = vmatpush1.msra.mxu0 0.0
    %371 = vmatprep.subr.mxu0 0.0
    %372 = vmatpush1.msra.mxu0 0.0
    %373 = vmatprep.subr.mxu0 0.0
    %374 = vmatpush1.msra.mxu0 0.0
    %375 = vmatprep.subr.mxu0 0.0
    %376 = vmatpush1.msra.mxu0 0.0
    %377 = vmatprep.subr.mxu0 0.0
    %378 = vmatpush1.msra.mxu0 0.0
    %379 = vmatprep.mubr.f32.mxu0 0.0
    %380 = vmatmul.mubr.f32.gmra.mrb[0].mxu0 1.0
    %v381 = vpop.f32.mrb[0].mxu0
    %v382 = vadd.f32 0.0, %v381
    %v383 = vpop.f32.mrb[0].mxu0
    %384 = vdwg.mxu0
    %v385 = vmul.f32 %v251, %v251
    %v386 = vmul.f32 %v254, %v254
    %v387 = vmul.f32 %v259, %v259
    %v388 = vmul.f32 %v262, %v262
    %v389 = vmul.f32 %v267, %v267
    %v390 = vmul.f32 %v270, %v270
    %v391 = vmul.f32 %v275, %v275
    %v392 = vmul.f32 %v278, %v278
    %v393 = vmul.f32 %v283, %v283
    %v394 = vmul.f32 %v286, %v286
    %v395 = vmul.f32 %v291, %v291
    %v396 = vmul.f32 %v294, %v294
    %v397 = vmul.f32 %v299, %v299
    %v398 = vmul.f32 %v302, %v302
    %v399 = vmul.f32 %v307, %v307
    %v400 = vmul.f32 %v310, %v310
    %401 = vmatprep.subr.mxu0 0.0
    %402 = vmatpush1.msra.mxu0 %v385
    %403 = vmatprep.subr.mxu0 0.0
    %404 = vmatpush1.msra.mxu0 %v386
    %405 = vmatprep.subr.mxu0 0.0
    %406 = vmatpush1.msra.mxu0 %v387
    %407 = vmatprep.subr.mxu0 0.0
    %408 = vmatpush1.msra.mxu0 %v388
    %409 = vmatprep.subr.mxu0 0.0
    %410 = vmatpush1.msra.mxu0 %v389
    %411 = vmatprep.subr.mxu0 0.0
    %412 = vmatpush1.msra.mxu0 %v390
    %413 = vmatprep.subr.mxu0 0.0
    %414 = vmatpush1.msra.mxu0 %v391
    %415 = vmatprep.subr.mxu0 0.0
    %416 = vmatpush1.msra.mxu0 %v392
    %417 = vmatprep.subr.mxu0 0.0
    %418 = vmatpush1.msra.mxu0 %v393
    %419 = vmatprep.subr.mxu0 0.0
    %420 = vmatpush1.msra.mxu0 %v394
    %421 = vmatprep.subr.mxu0 0.0
    %422 = vmatpush1.msra.mxu0 %v395
    %423 = vmatprep.subr.mxu0 0.0
    %424 = vmatpush1.msra.mxu0 %v396
    %425 = vmatprep.subr.mxu0 0.0
    %426 = vmatpush1.msra.mxu0 %v397
    %427 = vmatprep.subr.mxu0 0.0
    %428 = vmatpush1.msra.mxu0 %v398
    %429 = vmatprep.subr.mxu0 0.0
    %430 = vmatpush1.msra.mxu0 %v399
    %431 = vmatprep.subr.mxu0 0.0
    %432 = vmatpush1.msra.mxu0 %v400
    %433 = vmatprep.subr.mxu0 0.0
    %434 = vmatpush1.msra.mxu0 0.0
    %435 = vmatprep.subr.mxu0 0.0
    %436 = vmatpush1.msra.mxu0 0.0
    %437 = vmatprep.subr.mxu0 0.0
    %438 = vmatpush1.msra.mxu0 0.0
    %439 = vmatprep.subr.mxu0 0.0
    %440 = vmatpush1.msra.mxu0 0.0
    %441 = vmatprep.subr.mxu0 0.0
    %442 = vmatpush1.msra.mxu0 0.0
    %443 = vmatprep.subr.mxu0 0.0
    %444 = vmatpush1.msra.mxu0 0.0
    %445 = vmatprep.subr.mxu0 0.0
    %446 = vmatpush1.msra.mxu0 0.0
    %447 = vmatprep.subr.mxu0 0.0
    %448 = vmatpush1.msra.mxu0 0.0
    %449 = vmatprep.subr.mxu0 0.0
    %450 = vmatpush1.msra.mxu0 0.0
    %451 = vmatprep.subr.mxu0 0.0
    %452 = vmatpush1.msra.mxu0 0.0
    %453 = vmatprep.subr.mxu0 0.0
    %454 = vmatpush1.msra.mxu0 0.0
    %455 = vmatprep.subr.mxu0 0.0
    %456 = vmatpush1.msra.mxu0 0.0
    %457 = vmatprep.subr.mxu0 0.0
    %458 = vmatpush1.msra.mxu0 0.0
    %459 = vmatprep.subr.mxu0 0.0
    %460 = vmatpush1.msra.mxu0 0.0
    %461 = vmatprep.subr.mxu0 0.0
    %462 = vmatpush1.msra.mxu0 0.0
    %463 = vmatprep.subr.mxu0 0.0
    %464 = vmatpush1.msra.mxu0 0.0
    %465 = vmatprep.mubr.f32.mxu0 0.0
    %466 = vmatmul.mubr.f32.gmra.mrb[0].mxu0 1.0
    %v467 = vpop.f32.mrb[0].mxu0
    %v468 = vadd.f32 0.0, %v467
    %v469 = vpop.f32.mrb[0].mxu0
    %470 = vdwg.mxu0
    %v471 = vmul.f32 %v382, 0.0078125
    %v472 = vmul.f32 %v468, 0.0078125
    %v473 = vmul.f32 %v471, %v471
    %v474 = vsub.f32 %v472, %v473
    %v475 = vadd.f32 %v474, 1e-05
    %v476 = vrsqrt.pop %v475
    %v477 = vmul.f32 %v313, %v476
    %v478 = vmul.f32 %v471, %v477
    %v479 = vsub.f32 %v314, %v478
    %v480 = vlaneseq
    %v481 = vshrl.u32 %v480, 7
    %v482 = vsub.s32 0, %v481
    %v483 = vrot.slane %v477, %v482
    %v484 = vmul.f32 %v251, %v483
    %v485 = vmul.f32 %v254, %v483
    %v486 = vmul.f32 %v259, %v483
    %v487 = vmul.f32 %v262, %v483
    %v488 = vmul.f32 %v267, %v483
    %v489 = vmul.f32 %v270, %v483
    %v490 = vmul.f32 %v275, %v483
    %v491 = vmul.f32 %v278, %v483
    %v492 = vmul.f32 %v283, %v483
    %v493 = vmul.f32 %v286, %v483
    %v494 = vmul.f32 %v291, %v483
    %v495 = vmul.f32 %v294, %v483
    %v496 = vmul.f32 %v299, %v483
    %v497 = vmul.f32 %v302, %v483
    %v498 = vmul.f32 %v307, %v483
    %v499 = vmul.f32 %v310, %v483
    %v500 = vlaneseq
    %v501 = vshrl.u32 %v500, 7
    %v502 = vsub.s32 0, %v501
    %v503 = vrot.slane %v479, %v502
    %v504 = vadd.f32 %v484, %v503
    %v505 = vadd.f32 %v485, %v503
    %v506 = vadd.f32 %v486, %v503
    %v507 = vadd.f32 %v487, %v503
    %v508 = vadd.f32 %v488, %v503
    %v509 = vadd.f32 %v489, %v503
    %v510 = vadd.f32 %v490, %v503
    %v511 = vadd.f32 %v491, %v503
    %v512 = vadd.f32 %v492, %v503
    %v513 = vadd.f32 %v493, %v503
    %v514 = vadd.f32 %v494, %v503
    %v515 = vadd.f32 %v495, %v503
    %v516 = vadd.f32 %v496, %v503
    %v517 = vadd.f32 %v497, %v503
    %v518 = vadd.f32 %v498, %v503
    %v519 = vadd.f32 %v499, %v503
    %v520 = vmax.f32 %v504, 0.0
    %v521 = vmax.f32 %v505, 0.0
    %v522 = vmax.f32 %v506, 0.0
    %v523 = vmax.f32 %v507, 0.0
    %v524 = vmax.f32 %v508, 0.0
    %v525 = vmax.f32 %v509, 0.0
    %v526 = vmax.f32 %v510, 0.0
    %v527 = vmax.f32 %v511, 0.0
    %v528 = vmax.f32 %v512, 0.0
    %v529 = vmax.f32 %v513, 0.0
    %v530 = vmax.f32 %v514, 0.0
    %v531 = vmax.f32 %v515, 0.0
    %v532 = vmax.f32 %v516, 0.0
    %v533 = vmax.f32 %v517, 0.0
    %v534 = vmax.f32 %v518, 0.0
    %v535 = vmax.f32 %v519, 0.0
    %v536 = vpack.c.bf16 %v521, %v520
    %v537 = vpack.c.bf16 %v523, %v522
    %v538 = vpack.c.bf16 %v525, %v524
    %v539 = vpack.c.bf16 %v527, %v526
    %v540 = vpack.c.bf16 %v529, %v528
    %v541 = vpack.c.bf16 %v531, %v530
    %v542 = vpack.c.bf16 %v533, %v532
    %v543 = vpack.c.bf16 %v535, %v534
    %v544 = vld [vmem:[#allocation7] sm:$0xf]
    %v545 = vld [vmem:[#allocation7 + $0x4] sm:$0xf]
    %v546 = vld [vmem:[#allocation7 + $0x8] sm:$0xf]
    %v547 = vld [vmem:[#allocation7 + $0xc] sm:$0xf]
    %v548 = vld [vmem:[#allocation7 + $0x10] sm:$0xf]
    %v549 = vld [vmem:[#allocation7 + $0x14] sm:$0xf]
    %v550 = vld [vmem:[#allocation7 + $0x18] sm:$0xf]
    %v551 = vld [vmem:[#allocation7 + $0x1c] sm:$0xf]
    %v560 = vunpack.c.l.b16 %v544
    %v561 = vunpack.c.l.b16 %v545
    %v562 = vunpack.c.l.b16 %v546
    %v563 = vunpack.c.l.b16 %v547
    %v564 = vunpack.c.l.b16 %v548
    %v565 = vunpack.c.l.b16 %v549
    %v566 = vunpack.c.l.b16 %v550
    %v567 = vunpack.c.l.b16 %v551
    %v568 = vpack.c.b16 %v561, %v560
    %v569 = vpack.c.b16 %v563, %v562
    %v570 = vpack.c.b16 %v565, %v564
    %v571 = vpack.c.b16 %v567, %v566
    %v577 = vsel %vm191, %v536, 0
    %v580 = vsel %vm191, %v537, 0
    %v583 = vsel %vm191, %v538, 0
    %v586 = vsel %vm191, %v539, 0
    %v589 = vsel %vm191, %v540, 0
    %v592 = vsel %vm191, %v541, 0
    %v595 = vsel %vm191, %v542, 0
    %v598 = vsel %vm191, %v543, 0
    %600 = vmatprep.subr.bf16.mxu0 0
    %601 = vmatpush1.bf16.msra.mxu0 %v568
    %602 = vmatprep.subr.bf16.mxu0 0
    %603 = vmatpush1.bf16.msra.mxu0 %v569
    %604 = vmatprep.subr.bf16.mxu0 0
    %605 = vmatpush1.bf16.msra.mxu0 %v570
    %606 = vmatprep.subr.bf16.mxu0 0
    %607 = vmatpush1.bf16.msra.mxu0 %v571
    %608 = vmatprep.subr.bf16.mxu0 0
    %609 = vmatpush1.bf16.msra.mxu0 0
    %610 = vmatprep.subr.bf16.mxu0 0
    %611 = vmatpush1.bf16.msra.mxu0 0
    %612 = vmatprep.subr.bf16.mxu0 0
    %613 = vmatpush1.bf16.msra.mxu0 0
    %614 = vmatprep.subr.bf16.mxu0 0
    %615 = vmatpush1.bf16.msra.mxu0 0
    %616 = vmatprep.subr.bf16.mxu0 0
    %617 = vmatpush1.bf16.msra.mxu0 0
    %618 = vmatprep.subr.bf16.mxu0 0
    %619 = vmatpush1.bf16.msra.mxu0 0
    %620 = vmatprep.subr.bf16.mxu0 0
    %621 = vmatpush1.bf16.msra.mxu0 0
    %622 = vmatprep.subr.bf16.mxu0 0
    %623 = vmatpush1.bf16.msra.mxu0 0
    %624 = vmatprep.subr.bf16.mxu0 0
    %625 = vmatpush1.bf16.msra.mxu0 0
    %626 = vmatprep.subr.bf16.mxu0 0
    %627 = vmatpush1.bf16.msra.mxu0 0
    %628 = vmatprep.subr.bf16.mxu0 0
    %629 = vmatpush1.bf16.msra.mxu0 0
    %630 = vmatprep.subr.bf16.mxu0 0
    %631 = vmatpush1.bf16.msra.mxu0 0
    %632 = vmatprep.mubr.bf16.mxu0 0
    %633 = vmatmul.mubr.bf16.gmra.mrb[0].mxu0 %v577
    %v634 = vpop.f32.mrb[0].mxu0
    %v635 = vadd.f32 0.0, %v634
    %v636 = vpop.f32.mrb[0].mxu0
    %v637 = vpop.f32.mrb[0].mxu0
    %v638 = vadd.f32 0.0, %v637
    %v639 = vpop.f32.mrb[0].mxu0
    %640 = vmatprep.mubr.bf16.mxu0 0
    %641 = vmatmul.mubr.bf16.gmra.mrb[0].mxu0 %v580
    %v642 = vpop.f32.mrb[0].mxu0
    %v643 = vadd.f32 0.0, %v642
    %v644 = vpop.f32.mrb[0].mxu0
    %v645 = vpop.f32.mrb[0].mxu0
    %v646 = vadd.f32 0.0, %v645
    %v647 = vpop.f32.mrb[0].mxu0
    %648 = vmatprep.mubr.bf16.mxu0 0
    %649 = vmatmul.mubr.bf16.gmra.mrb[0].mxu0 %v583
    %v650 = vpop.f32.mrb[0].mxu0
    %v651 = vadd.f32 0.0, %v650
    %v652 = vpop.f32.mrb[0].mxu0
    %v653 = vpop.f32.mrb[0].mxu0
    %v654 = vadd.f32 0.0, %v653
    %v655 = vpop.f32.mrb[0].mxu0
    %656 = vmatprep.mubr.bf16.mxu0 0
    %657 = vmatmul.mubr.bf16.gmra.mrb[0].mxu0 %v586
    %v658 = vpop.f32.mrb[0].mxu0
    %v659 = vadd.f32 0.0, %v658
    %v660 = vpop.f32.mrb[0].mxu0
    %v661 = vpop.f32.mrb[0].mxu0
    %v662 = vadd.f32 0.0, %v661
    %v663 = vpop.f32.mrb[0].mxu0
    %664 = vmatprep.mubr.bf16.mxu0 0
    %665 = vmatmul.mubr.bf16.gmra.mrb[0].mxu0 %v589
    %v666 = vpop.f32.mrb[0].mxu0
    %v667 = vadd.f32 0.0, %v666
    %v668 = vpop.f32.mrb[0].mxu0
    %v669 = vpop.f32.mrb[0].mxu0
    %v670 = vadd.f32 0.0, %v669
    %v671 = vpop.f32.mrb[0].mxu0
    %672 = vmatprep.mubr.bf16.mxu0 0
    %673 = vmatmul.mubr.bf16.gmra.mrb[0].mxu0 %v592
    %v674 = vpop.f32.mrb[0].mxu0
    %v675 = vadd.f32 0.0, %v674
    %v676 = vpop.f32.mrb[0].mxu0
    %v677 = vpop.f32.mrb[0].mxu0
    %v678 = vadd.f32 0.0, %v677
    %v679 = vpop.f32.mrb[0].mxu0
    %680 = vmatprep.mubr.bf16.mxu0 0
    %681 = vmatmul.mubr.bf16.gmra.mrb[0].mxu0 %v595
    %v682 = vpop.f32.mrb[0].mxu0
    %v683 = vadd.f32 0.0, %v682
    %v684 = vpop.f32.mrb[0].mxu0
    %v685 = vpop.f32.mrb[0].mxu0
    %v686 = vadd.f32 0.0, %v685
    %v687 = vpop.f32.mrb[0].mxu0
    %688 = vmatprep.mubr.bf16.mxu0 0
    %689 = vmatmul.mubr.bf16.gmra.mrb[0].mxu0 %v598
    %v690 = vpop.f32.mrb[0].mxu0
    %v691 = vadd.f32 0.0, %v690
    %v692 = vpop.f32.mrb[0].mxu0
    %v693 = vpop.f32.mrb[0].mxu0
    %v694 = vadd.f32 0.0, %v693
    %v695 = vpop.f32.mrb[0].mxu0
    %696 = vdwg.mxu0
    %v697 = vld [vmem:[#allocation11 + $0x1] sm:$0x1]
    %v698 = vld [vmem:[#allocation11 + $0x5] sm:$0x1]
    %699 = vmatprep.subr.mxu0 0.0
    %700 = vmatpush1.msra.mxu0 %v635
    %701 = vmatprep.subr.mxu0 0.0
    %702 = vmatpush1.msra.mxu0 %v638
    %703 = vmatprep.subr.mxu0 0.0
    %704 = vmatpush1.msra.mxu0 %v643
    %705 = vmatprep.subr.mxu0 0.0
    %706 = vmatpush1.msra.mxu0 %v646
    %707 = vmatprep.subr.mxu0 0.0
    %708 = vmatpush1.msra.mxu0 %v651
    %709 = vmatprep.subr.mxu0 0.0
    %710 = vmatpush1.msra.mxu0 %v654
    %711 = vmatprep.subr.mxu0 0.0
    %712 = vmatpush1.msra.mxu0 %v659
    %713 = vmatprep.subr.mxu0 0.0
    %714 = vmatpush1.msra.mxu0 %v662
    %715 = vmatprep.subr.mxu0 0.0
    %716 = vmatpush1.msra.mxu0 %v667
    %717 = vmatprep.subr.mxu0 0.0
    %718 = vmatpush1.msra.mxu0 %v670
    %719 = vmatprep.subr.mxu0 0.0
    %720 = vmatpush1.msra.mxu0 %v675
    %721 = vmatprep.subr.mxu0 0.0
    %722 = vmatpush1.msra.mxu0 %v678
    %723 = vmatprep.subr.mxu0 0.0
    %724 = vmatpush1.msra.mxu0 %v683
    %725 = vmatprep.subr.mxu0 0.0
    %726 = vmatpush1.msra.mxu0 %v686
    %727 = vmatprep.subr.mxu0 0.0
    %728 = vmatpush1.msra.mxu0 %v691
    %729 = vmatprep.subr.mxu0 0.0
    %730 = vmatpush1.msra.mxu0 %v694
    %731 = vmatprep.subr.mxu0 0.0
    %732 = vmatpush1.msra.mxu0 0.0
    %733 = vmatprep.subr.mxu0 0.0
    %734 = vmatpush1.msra.mxu0 0.0
    %735 = vmatprep.subr.mxu0 0.0
    %736 = vmatpush1.msra.mxu0 0.0
    %737 = vmatprep.subr.mxu0 0.0
    %738 = vmatpush1.msra.mxu0 0.0
    %739 = vmatprep.subr.mxu0 0.0
    %740 = vmatpush1.msra.mxu0 0.0
    %741 = vmatprep.subr.mxu0 0.0
    %742 = vmatpush1.msra.mxu0 0.0
    %743 = vmatprep.subr.mxu0 0.0
    %744 = vmatpush1.msra.mxu0 0.0
    %745 = vmatprep.subr.mxu0 0.0
    %746 = vmatpush1.msra.mxu0 0.0
    %747 = vmatprep.subr.mxu0 0.0
    %748 = vmatpush1.msra.mxu0 0.0
    %749 = vmatprep.subr.mxu0 0.0
    %750 = vmatpush1.msra.mxu0 0.0
    %751 = vmatprep.subr.mxu0 0.0
    %752 = vmatpush1.msra.mxu0 0.0
    %753 = vmatprep.subr.mxu0 0.0
    %754 = vmatpush1.msra.mxu0 0.0
    %755 = vmatprep.subr.mxu0 0.0
    %756 = vmatpush1.msra.mxu0 0.0
    %757 = vmatprep.subr.mxu0 0.0
    %758 = vmatpush1.msra.mxu0 0.0
    %759 = vmatprep.subr.mxu0 0.0
    %760 = vmatpush1.msra.mxu0 0.0
    %761 = vmatprep.subr.mxu0 0.0
    %762 = vmatpush1.msra.mxu0 0.0
    %763 = vmatprep.mubr.f32.mxu0 0.0
    %764 = vmatmul.mubr.f32.gmra.mrb[0].mxu0 1.0
    %v765 = vpop.f32.mrb[0].mxu0
    %v766 = vadd.f32 0.0, %v765
    %v767 = vpop.f32.mrb[0].mxu0
    %768 = vdwg.mxu0
    %v769 = vmul.f32 %v635, %v635
    %v770 = vmul.f32 %v638, %v638
    %v771 = vmul.f32 %v643, %v643
    %v772 = vmul.f32 %v646, %v646
    %v773 = vmul.f32 %v651, %v651
    %v774 = vmul.f32 %v654, %v654
    %v775 = vmul.f32 %v659, %v659
    %v776 = vmul.f32 %v662, %v662
    %v777 = vmul.f32 %v667, %v667
    %v778 = vmul.f32 %v670, %v670
    %v779 = vmul.f32 %v675, %v675
    %v780 = vmul.f32 %v678, %v678
    %v781 = vmul.f32 %v683, %v683
    %v782 = vmul.f32 %v686, %v686
    %v783 = vmul.f32 %v691, %v691
    %v784 = vmul.f32 %v694, %v694
    %785 = vmatprep.subr.mxu0 0.0
    %786 = vmatpush1.msra.mxu0 %v769
    %787 = vmatprep.subr.mxu0 0.0
    %788 = vmatpush1.msra.mxu0 %v770
    %789 = vmatprep.subr.mxu0 0.0
    %790 = vmatpush1.msra.mxu0 %v771
    %791 = vmatprep.subr.mxu0 0.0
    %792 = vmatpush1.msra.mxu0 %v772
    %793 = vmatprep.subr.mxu0 0.0
    %794 = vmatpush1.msra.mxu0 %v773
    %795 = vmatprep.subr.mxu0 0.0
    %796 = vmatpush1.msra.mxu0 %v774
    %797 = vmatprep.subr.mxu0 0.0
    %798 = vmatpush1.msra.mxu0 %v775
    %799 = vmatprep.subr.mxu0 0.0
    %800 = vmatpush1.msra.mxu0 %v776
    %801 = vmatprep.subr.mxu0 0.0
    %802 = vmatpush1.msra.mxu0 %v777
    %803 = vmatprep.subr.mxu0 0.0
    %804 = vmatpush1.msra.mxu0 %v778
    %805 = vmatprep.subr.mxu0 0.0
    %806 = vmatpush1.msra.mxu0 %v779
    %807 = vmatprep.subr.mxu0 0.0
    %808 = vmatpush1.msra.mxu0 %v780
    %809 = vmatprep.subr.mxu0 0.0
    %810 = vmatpush1.msra.mxu0 %v781
    %811 = vmatprep.subr.mxu0 0.0
    %812 = vmatpush1.msra.mxu0 %v782
    %813 = vmatprep.subr.mxu0 0.0
    %814 = vmatpush1.msra.mxu0 %v783
    %815 = vmatprep.subr.mxu0 0.0
    %816 = vmatpush1.msra.mxu0 %v784
    %817 = vmatprep.subr.mxu0 0.0
    %818 = vmatpush1.msra.mxu0 0.0
    %819 = vmatprep.subr.mxu0 0.0
    %820 = vmatpush1.msra.mxu0 0.0
    %821 = vmatprep.subr.mxu0 0.0
    %822 = vmatpush1.msra.mxu0 0.0
    %823 = vmatprep.subr.mxu0 0.0
    %824 = vmatpush1.msra.mxu0 0.0
    %825 = vmatprep.subr.mxu0 0.0
    %826 = vmatpush1.msra.mxu0 0.0
    %827 = vmatprep.subr.mxu0 0.0
    %828 = vmatpush1.msra.mxu0 0.0
    %829 = vmatprep.subr.mxu0 0.0
    %830 = vmatpush1.msra.mxu0 0.0
    %831 = vmatprep.subr.mxu0 0.0
    %832 = vmatpush1.msra.mxu0 0.0
    %833 = vmatprep.subr.mxu0 0.0
    %834 = vmatpush1.msra.mxu0 0.0
    %835 = vmatprep.subr.mxu0 0.0
    %836 = vmatpush1.msra.mxu0 0.0
    %837 = vmatprep.subr.mxu0 0.0
    %838 = vmatpush1.msra.mxu0 0.0
    %839 = vmatprep.subr.mxu0 0.0
    %840 = vmatpush1.msra.mxu0 0.0
    %841 = vmatprep.subr.mxu0 0.0
    %842 = vmatpush1.msra.mxu0 0.0
    %843 = vmatprep.subr.mxu0 0.0
    %844 = vmatpush1.msra.mxu0 0.0
    %845 = vmatprep.subr.mxu0 0.0
    %846 = vmatpush1.msra.mxu0 0.0
    %847 = vmatprep.subr.mxu0 0.0
    %848 = vmatpush1.msra.mxu0 0.0
    %849 = vmatprep.mubr.f32.mxu0 0.0
    %850 = vmatmul.mubr.f32.gmra.mrb[0].mxu0 1.0
    %v851 = vpop.f32.mrb[0].mxu0
    %v852 = vadd.f32 0.0, %v851
    %v853 = vpop.f32.mrb[0].mxu0
    %854 = vdwg.mxu0
    %v855 = vmul.f32 %v766, 0.0078125
    %v856 = vmul.f32 %v852, 0.0078125
    %v857 = vmul.f32 %v855, %v855
    %v858 = vsub.f32 %v856, %v857
    %v859 = vadd.f32 %v858, 1e-05
    %v860 = vrsqrt.pop %v859
    %v861 = vmul.f32 %v697, %v860
    %v862 = vmul.f32 %v855, %v861
    %v863 = vsub.f32 %v698, %v862
    %v864 = vlaneseq
    %v865 = vshrl.u32 %v864, 7
    %v866 = vsub.s32 0, %v865
    %v867 = vrot.slane %v861, %v866
    %v868 = vmul.f32 %v635, %v867
    %v869 = vmul.f32 %v638, %v867
    %v870 = vmul.f32 %v643, %v867
    %v871 = vmul.f32 %v646, %v867
    %v872 = vmul.f32 %v651, %v867
    %v873 = vmul.f32 %v654, %v867
    %v874 = vmul.f32 %v659, %v867
    %v875 = vmul.f32 %v662, %v867
    %v876 = vmul.f32 %v667, %v867
    %v877 = vmul.f32 %v670, %v867
    %v878 = vmul.f32 %v675, %v867
    %v879 = vmul.f32 %v678, %v867
    %v880 = vmul.f32 %v683, %v867
    %v881 = vmul.f32 %v686, %v867
    %v882 = vmul.f32 %v691, %v867
    %v883 = vmul.f32 %v694, %v867
    %v884 = vlaneseq
    %v885 = vshrl.u32 %v884, 7
    %v886 = vsub.s32 0, %v885
    %v887 = vrot.slane %v863, %v886
    %v888 = vadd.f32 %v868, %v887
    %v889 = vadd.f32 %v869, %v887
    %v890 = vadd.f32 %v870, %v887
    %v891 = vadd.f32 %v871, %v887
    %v892 = vadd.f32 %v872, %v887
    %v893 = vadd.f32 %v873, %v887
    %v894 = vadd.f32 %v874, %v887
    %v895 = vadd.f32 %v875, %v887
    %v896 = vadd.f32 %v876, %v887
    %v897 = vadd.f32 %v877, %v887
    %v898 = vadd.f32 %v878, %v887
    %v899 = vadd.f32 %v879, %v887
    %v900 = vadd.f32 %v880, %v887
    %v901 = vadd.f32 %v881, %v887
    %v902 = vadd.f32 %v882, %v887
    %v903 = vadd.f32 %v883, %v887
    %v904 = vmax.f32 %v888, 0.0
    %v905 = vmax.f32 %v889, 0.0
    %v906 = vmax.f32 %v890, 0.0
    %v907 = vmax.f32 %v891, 0.0
    %v908 = vmax.f32 %v892, 0.0
    %v909 = vmax.f32 %v893, 0.0
    %v910 = vmax.f32 %v894, 0.0
    %v911 = vmax.f32 %v895, 0.0
    %v912 = vmax.f32 %v896, 0.0
    %v913 = vmax.f32 %v897, 0.0
    %v914 = vmax.f32 %v898, 0.0
    %v915 = vmax.f32 %v899, 0.0
    %v916 = vmax.f32 %v900, 0.0
    %v917 = vmax.f32 %v901, 0.0
    %v918 = vmax.f32 %v902, 0.0
    %v919 = vmax.f32 %v903, 0.0
    %v920 = vpack.c.bf16 %v905, %v904
    %v921 = vpack.c.bf16 %v907, %v906
    %v922 = vpack.c.bf16 %v909, %v908
    %v923 = vpack.c.bf16 %v911, %v910
    %v924 = vpack.c.bf16 %v913, %v912
    %v925 = vpack.c.bf16 %v915, %v914
    %v926 = vpack.c.bf16 %v917, %v916
    %v927 = vpack.c.bf16 %v919, %v918
    %v928 = vld [vmem:[#allocation8] sm:$0xf]
    %v929 = vld [vmem:[#allocation8 + $0x4] sm:$0xf]
    %v930 = vld [vmem:[#allocation8 + $0x8] sm:$0xf]
    %v931 = vld [vmem:[#allocation8 + $0xc] sm:$0xf]
    %v936 = vunpack.c.l.b16 %v928
    %v937 = vunpack.c.l.b16 %v929
    %v938 = vunpack.c.l.b16 %v930
    %v939 = vunpack.c.l.b16 %v931
    %v940 = vpack.c.b16 %v937, %v936
    %v941 = vpack.c.b16 %v939, %v938
    %vm944 = vcmask 261120
    %v946 = vsel %vm944, %v920, 0
    %v949 = vsel %vm944, %v921, 0
    %v952 = vsel %vm944, %v922, 0
    %v955 = vsel %vm944, %v923, 0
    %v958 = vsel %vm944, %v924, 0
    %v961 = vsel %vm944, %v925, 0
    %v964 = vsel %vm944, %v926, 0
    %v967 = vsel %vm944, %v927, 0
    %969 = vmatprep.subr.bf16.mxu0 0
    %970 = vmatpush1.bf16.msra.mxu0 %v940
    %971 = vmatprep.subr.bf16.mxu0 0
    %972 = vmatpush1.bf16.msra.mxu0 %v941
    %973 = vmatprep.subr.bf16.mxu0 0
    %974 = vmatpush1.bf16.msra.mxu0 0
    %975 = vmatprep.subr.bf16.mxu0 0
    %976 = vmatpush1.bf16.msra.mxu0 0
    %977 = vmatprep.subr.bf16.mxu0 0
    %978 = vmatpush1.bf16.msra.mxu0 0
    %979 = vmatprep.subr.bf16.mxu0 0
    %980 = vmatpush1.bf16.msra.mxu0 0
    %981 = vmatprep.subr.bf16.mxu0 0
    %982 = vmatpush1.bf16.msra.mxu0 0
    %983 = vmatprep.subr.bf16.mxu0 0
    %984 = vmatpush1.bf16.msra.mxu0 0
    %985 = vmatprep.subr.bf16.mxu0 0
    %986 = vmatpush1.bf16.msra.mxu0 0
    %987 = vmatprep.subr.bf16.mxu0 0
    %988 = vmatpush1.bf16.msra.mxu0 0
    %989 = vmatprep.subr.bf16.mxu0 0
    %990 = vmatpush1.bf16.msra.mxu0 0
    %991 = vmatprep.subr.bf16.mxu0 0
    %992 = vmatpush1.bf16.msra.mxu0 0
    %993 = vmatprep.subr.bf16.mxu0 0
    %994 = vmatpush1.bf16.msra.mxu0 0
    %995 = vmatprep.subr.bf16.mxu0 0
    %996 = vmatpush1.bf16.msra.mxu0 0
    %997 = vmatprep.subr.bf16.mxu0 0
    %998 = vmatpush1.bf16.msra.mxu0 0
    %999 = vmatprep.subr.bf16.mxu0 0
    %1000 = vmatpush1.bf16.msra.mxu0 0
    %1001 = vmatprep.mubr.bf16.mxu0 0
    %1002 = vmatmul.mubr.bf16.gmra.mrb[0].mxu0 %v946
    %v1003 = vpop.f32.mrb[0].mxu0
    %v1004 = vadd.f32 0.0, %v1003
    %v1005 = vpop.f32.mrb[0].mxu0
    %v1006 = vpop.f32.mrb[0].mxu0
    %v1007 = vadd.f32 0.0, %v1006
    %v1008 = vpop.f32.mrb[0].mxu0
    %1009 = vmatprep.mubr.bf16.mxu0 0
    %1010 = vmatmul.mubr.bf16.gmra.mrb[0].mxu0 %v949
    %v1011 = vpop.f32.mrb[0].mxu0
    %v1012 = vadd.f32 0.0, %v1011
    %v1013 = vpop.f32.mrb[0].mxu0
    %v1014 = vpop.f32.mrb[0].mxu0
    %v1015 = vadd.f32 0.0, %v1014
    %v1016 = vpop.f32.mrb[0].mxu0
    %1017 = vmatprep.mubr.bf16.mxu0 0
    %1018 = vmatmul.mubr.bf16.gmra.mrb[0].mxu0 %v952
    %v1019 = vpop.f32.mrb[0].mxu0
    %v1020 = vadd.f32 0.0, %v1019
    %v1021 = vpop.f32.mrb[0].mxu0
    %v1022 = vpop.f32.mrb[0].mxu0
    %v1023 = vadd.f32 0.0, %v1022
    %v1024 = vpop.f32.mrb[0].mxu0
    %1025 = vmatprep.mubr.bf16.mxu0 0
    %1026 = vmatmul.mubr.bf16.gmra.mrb[0].mxu0 %v955
    %v1027 = vpop.f32.mrb[0].mxu0
    %v1028 = vadd.f32 0.0, %v1027
    %v1029 = vpop.f32.mrb[0].mxu0
    %v1030 = vpop.f32.mrb[0].mxu0
    %v1031 = vadd.f32 0.0, %v1030
    %v1032 = vpop.f32.mrb[0].mxu0
    %1033 = vmatprep.mubr.bf16.mxu0 0
    %1034 = vmatmul.mubr.bf16.gmra.mrb[0].mxu0 %v958
    %v1035 = vpop.f32.mrb[0].mxu0
    %v1036 = vadd.f32 0.0, %v1035
    %v1037 = vpop.f32.mrb[0].mxu0
    %v1038 = vpop.f32.mrb[0].mxu0
    %v1039 = vadd.f32 0.0, %v1038
    %v1040 = vpop.f32.mrb[0].mxu0
    %1041 = vmatprep.mubr.bf16.mxu0 0
    %1042 = vmatmul.mubr.bf16.gmra.mrb[0].mxu0 %v961
    %v1043 = vpop.f32.mrb[0].mxu0
    %v1044 = vadd.f32 0.0, %v1043
    %v1045 = vpop.f32.mrb[0].mxu0
    %v1046 = vpop.f32.mrb[0].mxu0
    %v1047 = vadd.f32 0.0, %v1046
    %v1048 = vpop.f32.mrb[0].mxu0
    %1049 = vmatprep.mubr.bf16.mxu0 0
    %1050 = vmatmul.mubr.bf16.gmra.mrb[0].mxu0 %v964
    %v1051 = vpop.f32.mrb[0].mxu0
    %v1052 = vadd.f32 0.0, %v1051
    %v1053 = vpop.f32.mrb[0].mxu0
    %v1054 = vpop.f32.mrb[0].mxu0
    %v1055 = vadd.f32 0.0, %v1054
    %v1056 = vpop.f32.mrb[0].mxu0
    %1057 = vmatprep.mubr.bf16.mxu0 0
    %1058 = vmatmul.mubr.bf16.gmra.mrb[0].mxu0 %v967
    %v1059 = vpop.f32.mrb[0].mxu0
    %v1060 = vadd.f32 0.0, %v1059
    %v1061 = vpop.f32.mrb[0].mxu0
    %v1062 = vpop.f32.mrb[0].mxu0
    %v1063 = vadd.f32 0.0, %v1062
    %v1064 = vpop.f32.mrb[0].mxu0
    %1065 = vdwg.mxu0
    %v1066 = vld [vmem:[#allocation11 + $0x2] sm:$0x1]
    %v1067 = vld [vmem:[#allocation11 + $0x6] sm:$0x1]
    %1068 = vmatprep.subr.mxu0 0.0
    %1069 = vmatpush1.msra.mxu0 %v1004
    %1070 = vmatprep.subr.mxu0 0.0
    %1071 = vmatpush1.msra.mxu0 %v1007
    %1072 = vmatprep.subr.mxu0 0.0
    %1073 = vmatpush1.msra.mxu0 %v1012
    %1074 = vmatprep.subr.mxu0 0.0
    %1075 = vmatpush1.msra.mxu0 %v1015
    %1076 = vmatprep.subr.mxu0 0.0
    %1077 = vmatpush1.msra.mxu0 %v1020
    %1078 = vmatprep.subr.mxu0 0.0
    %1079 = vmatpush1.msra.mxu0 %v1023
    %1080 = vmatprep.subr.mxu0 0.0
    %1081 = vmatpush1.msra.mxu0 %v1028
    %1082 = vmatprep.subr.mxu0 0.0
    %1083 = vmatpush1.msra.mxu0 %v1031
    %1084 = vmatprep.subr.mxu0 0.0
    %1085 = vmatpush1.msra.mxu0 %v1036
    %1086 = vmatprep.subr.mxu0 0.0
    %1087 = vmatpush1.msra.mxu0 %v1039
    %1088 = vmatprep.subr.mxu0 0.0
    %1089 = vmatpush1.msra.mxu0 %v1044
    %1090 = vmatprep.subr.mxu0 0.0
    %1091 = vmatpush1.msra.mxu0 %v1047
    %1092 = vmatprep.subr.mxu0 0.0
    %1093 = vmatpush1.msra.mxu0 %v1052
    %1094 = vmatprep.subr.mxu0 0.0
    %1095 = vmatpush1.msra.mxu0 %v1055
    %1096 = vmatprep.subr.mxu0 0.0
    %1097 = vmatpush1.msra.mxu0 %v1060
    %1098 = vmatprep.subr.mxu0 0.0
    %1099 = vmatpush1.msra.mxu0 %v1063
    %1100 = vmatprep.subr.mxu0 0.0
    %1101 = vmatpush1.msra.mxu0 0.0
    %1102 = vmatprep.subr.mxu0 0.0
    %1103 = vmatpush1.msra.mxu0 0.0
    %1104 = vmatprep.subr.mxu0 0.0
    %1105 = vmatpush1.msra.mxu0 0.0
    %1106 = vmatprep.subr.mxu0 0.0
    %1107 = vmatpush1.msra.mxu0 0.0
    %1108 = vmatprep.subr.mxu0 0.0
    %1109 = vmatpush1.msra.mxu0 0.0
    %1110 = vmatprep.subr.mxu0 0.0
    %1111 = vmatpush1.msra.mxu0 0.0
    %1112 = vmatprep.subr.mxu0 0.0
    %1113 = vmatpush1.msra.mxu0 0.0
    %1114 = vmatprep.subr.mxu0 0.0
    %1115 = vmatpush1.msra.mxu0 0.0
    %1116 = vmatprep.subr.mxu0 0.0
    %1117 = vmatpush1.msra.mxu0 0.0
    %1118 = vmatprep.subr.mxu0 0.0
    %1119 = vmatpush1.msra.mxu0 0.0
    %1120 = vmatprep.subr.mxu0 0.0
    %1121 = vmatpush1.msra.mxu0 0.0
    %1122 = vmatprep.subr.mxu0 0.0
    %1123 = vmatpush1.msra.mxu0 0.0
    %1124 = vmatprep.subr.mxu0 0.0
    %1125 = vmatpush1.msra.mxu0 0.0
    %1126 = vmatprep.subr.mxu0 0.0
    %1127 = vmatpush1.msra.mxu0 0.0
    %1128 = vmatprep.subr.mxu0 0.0
    %1129 = vmatpush1.msra.mxu0 0.0
    %1130 = vmatprep.subr.mxu0 0.0
    %1131 = vmatpush1.msra.mxu0 0.0
    %1132 = vmatprep.mubr.f32.mxu0 0.0
    %1133 = vmatmul.mubr.f32.gmra.mrb[0].mxu0 1.0
    %v1134 = vpop.f32.mrb[0].mxu0
    %v1135 = vadd.f32 0.0, %v1134
    %v1136 = vpop.f32.mrb[0].mxu0
    %1137 = vdwg.mxu0
    %v1138 = vmul.f32 %v1004, %v1004
    %v1139 = vmul.f32 %v1007, %v1007
    %v1140 = vmul.f32 %v1012, %v1012
    %v1141 = vmul.f32 %v1015, %v1015
    %v1142 = vmul.f32 %v1020, %v1020
    %v1143 = vmul.f32 %v1023, %v1023
    %v1144 = vmul.f32 %v1028, %v1028
    %v1145 = vmul.f32 %v1031, %v1031
    %v1146 = vmul.f32 %v1036, %v1036
    %v1147 = vmul.f32 %v1039, %v1039
    %v1148 = vmul.f32 %v1044, %v1044
    %v1149 = vmul.f32 %v1047, %v1047
    %v1150 = vmul.f32 %v1052, %v1052
    %v1151 = vmul.f32 %v1055, %v1055
    %v1152 = vmul.f32 %v1060, %v1060
    %v1153 = vmul.f32 %v1063, %v1063
    %1154 = vmatprep.subr.mxu0 0.0
    %1155 = vmatpush1.msra.mxu0 %v1138
    %1156 = vmatprep.subr.mxu0 0.0
    %1157 = vmatpush1.msra.mxu0 %v1139
    %1158 = vmatprep.subr.mxu0 0.0
    %1159 = vmatpush1.msra.mxu0 %v1140
    %1160 = vmatprep.subr.mxu0 0.0
    %1161 = vmatpush1.msra.mxu0 %v1141
    %1162 = vmatprep.subr.mxu0 0.0
    %1163 = vmatpush1.msra.mxu0 %v1142
    %1164 = vmatprep.subr.mxu0 0.0
    %1165 = vmatpush1.msra.mxu0 %v1143
    %1166 = vmatprep.subr.mxu0 0.0
    %1167 = vmatpush1.msra.mxu0 %v1144
    %1168 = vmatprep.subr.mxu0 0.0
    %1169 = vmatpush1.msra.mxu0 %v1145
    %1170 = vmatprep.subr.mxu0 0.0
    %1171 = vmatpush1.msra.mxu0 %v1146
    %1172 = vmatprep.subr.mxu0 0.0
    %1173 = vmatpush1.msra.mxu0 %v1147
    %1174 = vmatprep.subr.mxu0 0.0
    %1175 = vmatpush1.msra.mxu0 %v1148
    %1176 = vmatprep.subr.mxu0 0.0
    %1177 = vmatpush1.msra.mxu0 %v1149
    %1178 = vmatprep.subr.mxu0 0.0
    %1179 = vmatpush1.msra.mxu0 %v1150
    %1180 = vmatprep.subr.mxu0 0.0
    %1181 = vmatpush1.msra.mxu0 %v1151
    %1182 = vmatprep.subr.mxu0 0.0
    %1183 = vmatpush1.msra.mxu0 %v1152
    %1184 = vmatprep.subr.mxu0 0.0
    %1185 = vmatpush1.msra.mxu0 %v1153
    %1186 = vmatprep.subr.mxu0 0.0
    %1187 = vmatpush1.msra.mxu0 0.0
    %1188 = vmatprep.subr.mxu0 0.0
    %1189 = vmatpush1.msra.mxu0 0.0
    %1190 = vmatprep.subr.mxu0 0.0
    %1191 = vmatpush1.msra.mxu0 0.0
    %1192 = vmatprep.subr.mxu0 0.0
    %1193 = vmatpush1.msra.mxu0 0.0
    %1194 = vmatprep.subr.mxu0 0.0
    %1195 = vmatpush1.msra.mxu0 0.0
    %1196 = vmatprep.subr.mxu0 0.0
    %1197 = vmatpush1.msra.mxu0 0.0
    %1198 = vmatprep.subr.mxu0 0.0
    %1199 = vmatpush1.msra.mxu0 0.0
    %1200 = vmatprep.subr.mxu0 0.0
    %1201 = vmatpush1.msra.mxu0 0.0
    %1202 = vmatprep.subr.mxu0 0.0
    %1203 = vmatpush1.msra.mxu0 0.0
    %1204 = vmatprep.subr.mxu0 0.0
    %1205 = vmatpush1.msra.mxu0 0.0
    %1206 = vmatprep.subr.mxu0 0.0
    %1207 = vmatpush1.msra.mxu0 0.0
    %1208 = vmatprep.subr.mxu0 0.0
    %1209 = vmatpush1.msra.mxu0 0.0
    %1210 = vmatprep.subr.mxu0 0.0
    %1211 = vmatpush1.msra.mxu0 0.0
    %1212 = vmatprep.subr.mxu0 0.0
    %1213 = vmatpush1.msra.mxu0 0.0
    %1214 = vmatprep.subr.mxu0 0.0
    %1215 = vmatpush1.msra.mxu0 0.0
    %1216 = vmatprep.subr.mxu0 0.0
    %1217 = vmatpush1.msra.mxu0 0.0
    %1218 = vmatprep.mubr.f32.mxu0 0.0
    %1219 = vmatmul.mubr.f32.gmra.mrb[0].mxu0 1.0
    %v1220 = vpop.f32.mrb[0].mxu0
    %v1221 = vadd.f32 0.0, %v1220
    %v1222 = vpop.f32.mrb[0].mxu0
    %1223 = vdwg.mxu0
    %v1224 = vmul.f32 %v1135, 0.0078125
    %v1225 = vmul.f32 %v1221, 0.0078125
    %v1226 = vmul.f32 %v1224, %v1224
    %v1227 = vsub.f32 %v1225, %v1226
    %v1228 = vadd.f32 %v1227, 1e-05
    %v1229 = vrsqrt.pop %v1228
    %v1230 = vmul.f32 %v1066, %v1229
    %v1231 = vmul.f32 %v1224, %v1230
    %v1232 = vsub.f32 %v1067, %v1231
    %v1233 = vlaneseq
    %v1234 = vshrl.u32 %v1233, 7
    %v1235 = vsub.s32 0, %v1234
    %v1236 = vrot.slane %v1230, %v1235
    %v1237 = vmul.f32 %v1004, %v1236
    %v1238 = vmul.f32 %v1007, %v1236
    %v1239 = vmul.f32 %v1012, %v1236
    %v1240 = vmul.f32 %v1015, %v1236
    %v1241 = vmul.f32 %v1020, %v1236
    %v1242 = vmul.f32 %v1023, %v1236
    %v1243 = vmul.f32 %v1028, %v1236
    %v1244 = vmul.f32 %v1031, %v1236
    %v1245 = vmul.f32 %v1036, %v1236
    %v1246 = vmul.f32 %v1039, %v1236
    %v1247 = vmul.f32 %v1044, %v1236
    %v1248 = vmul.f32 %v1047, %v1236
    %v1249 = vmul.f32 %v1052, %v1236
    %v1250 = vmul.f32 %v1055, %v1236
    %v1251 = vmul.f32 %v1060, %v1236
    %v1252 = vmul.f32 %v1063, %v1236
    %v1253 = vlaneseq
    %v1254 = vshrl.u32 %v1253, 7
    %v1255 = vsub.s32 0, %v1254
    %v1256 = vrot.slane %v1232, %v1255
    %v1257 = vadd.f32 %v1237, %v1256
    %v1258 = vadd.f32 %v1238, %v1256
    %v1259 = vadd.f32 %v1239, %v1256
    %v1260 = vadd.f32 %v1240, %v1256
    %v1261 = vadd.f32 %v1241, %v1256
    %v1262 = vadd.f32 %v1242, %v1256
    %v1263 = vadd.f32 %v1243, %v1256
    %v1264 = vadd.f32 %v1244, %v1256
    %v1265 = vadd.f32 %v1245, %v1256
    %v1266 = vadd.f32 %v1246, %v1256
    %v1267 = vadd.f32 %v1247, %v1256
    %v1268 = vadd.f32 %v1248, %v1256
    %v1269 = vadd.f32 %v1249, %v1256
    %v1270 = vadd.f32 %v1250, %v1256
    %v1271 = vadd.f32 %v1251, %v1256
    %v1272 = vadd.f32 %v1252, %v1256
    %v1273 = vmax.f32 %v1257, 0.0
    %v1274 = vmax.f32 %v1258, 0.0
    %v1275 = vmax.f32 %v1259, 0.0
    %v1276 = vmax.f32 %v1260, 0.0
    %v1277 = vmax.f32 %v1261, 0.0
    %v1278 = vmax.f32 %v1262, 0.0
    %v1279 = vmax.f32 %v1263, 0.0
    %v1280 = vmax.f32 %v1264, 0.0
    %v1281 = vmax.f32 %v1265, 0.0
    %v1282 = vmax.f32 %v1266, 0.0
    %v1283 = vmax.f32 %v1267, 0.0
    %v1284 = vmax.f32 %v1268, 0.0
    %v1285 = vmax.f32 %v1269, 0.0
    %v1286 = vmax.f32 %v1270, 0.0
    %v1287 = vmax.f32 %v1271, 0.0
    %v1288 = vmax.f32 %v1272, 0.0
    %v1289 = vpack.c.bf16 %v1274, %v1273
    %v1290 = vpack.c.bf16 %v1276, %v1275
    %v1291 = vpack.c.bf16 %v1278, %v1277
    %v1292 = vpack.c.bf16 %v1280, %v1279
    %v1293 = vpack.c.bf16 %v1282, %v1281
    %v1294 = vpack.c.bf16 %v1284, %v1283
    %v1295 = vpack.c.bf16 %v1286, %v1285
    %v1296 = vpack.c.bf16 %v1288, %v1287
    %v1297 = vld [vmem:[#allocation10] sm:$0x1]
    %vm1298 = vcmask 130048
    %v1300 = vsel %vm1298, %v1297, 0
    %v1303 = vsel %vm1298, %v1289, 0
    %v1306 = vsel %vm1298, %v1290, 0
    %v1309 = vsel %vm1298, %v1291, 0
    %v1312 = vsel %vm1298, %v1292, 0
    %v1315 = vsel %vm1298, %v1293, 0
    %v1318 = vsel %vm1298, %v1294, 0
    %v1321 = vsel %vm1298, %v1295, 0
    %v1324 = vsel %vm1298, %v1296, 0
    %1326 = vmatprep.subr.bf16.mxu0 0
    %1327 = vmatpush1.bf16.xpose.msra.mxu0 %v1303
    %1328 = vmatprep.subr.bf16.mxu0 0
    %1329 = vmatpush1.bf16.xpose.msra.mxu0 %v1306
    %1330 = vmatprep.subr.bf16.mxu0 0
    %1331 = vmatpush1.bf16.xpose.msra.mxu0 %v1309
    %1332 = vmatprep.subr.bf16.mxu0 0
    %1333 = vmatpush1.bf16.xpose.msra.mxu0 %v1312
    %1334 = vmatprep.subr.bf16.mxu0 0
    %1335 = vmatpush1.bf16.xpose.msra.mxu0 %v1315
    %1336 = vmatprep.subr.bf16.mxu0 0
    %1337 = vmatpush1.bf16.xpose.msra.mxu0 %v1318
    %1338 = vmatprep.subr.bf16.mxu0 0
    %1339 = vmatpush1.bf16.xpose.msra.mxu0 %v1321
    %1340 = vmatprep.subr.bf16.mxu0 0
    %1341 = vmatpush1.bf16.xpose.msra.mxu0 %v1324
    %1342 = vmatprep.subr.bf16.mxu0 0
    %1343 = vmatpush1.bf16.xpose.msra.mxu0 0
    %1344 = vmatprep.subr.bf16.mxu0 0
    %1345 = vmatpush1.bf16.xpose.msra.mxu0 0
    %1346 = vmatprep.subr.bf16.mxu0 0
    %1347 = vmatpush1.bf16.xpose.msra.mxu0 0
    %1348 = vmatprep.subr.bf16.mxu0 0
    %1349 = vmatpush1.bf16.xpose.msra.mxu0 0
    %1350 = vmatprep.subr.bf16.mxu0 0
    %1351 = vmatpush1.bf16.xpose.msra.mxu0 0
    %1352 = vmatprep.subr.bf16.mxu0 0
    %1353 = vmatpush1.bf16.xpose.msra.mxu0 0
    %1354 = vmatprep.subr.bf16.mxu0 0
    %1355 = vmatpush1.bf16.xpose.msra.mxu0 0
    %1356 = vmatprep.subr.bf16.mxu0 0
    %1357 = vmatpush1.bf16.xpose.msra.mxu0 0
    %1358 = vmatprep.mubr.bf16.mxu0 0
    %1359 = vmatmul.mubr.bf16.gmra.mrb[0].mxu0 %v1300
    %v1360 = vpop.f32.mrb[0].mxu0
    %v1361 = vadd.f32 0.0, %v1360
    %v1362 = vpop.f32.mrb[0].mxu0
    %v1363 = vpop.f32.mrb[0].mxu0
    %v1364 = vpop.f32.mrb[0].mxu0
    %1365 = vdwg.mxu0
    %vm1366 = vcmask 1040384
    %v1367 = vsel %vm1366, %v1361, 0.0
    %1368 = vadd.xlane.f32.xlu0 %v1367
    %v1369 = vpop.xlane.xlu0 %1368
    %v1370 = vrot.slane %v1369, 4
    %v1371 = vadd.f32 %v1369, %v1370
    %v1372 = vrot.slane %v1371, 2
    %v1373 = vadd.f32 %v1371, %v1372
    %v1374 = vrot.slane %v1373, 1
    %v1375 = vadd.f32 %v1373, %v1374
    %s1376 = vtos %v1375
    %v1377 = vstv %s1376
    %v1378 = vmul.f32 %v1361, %v1361
    %v1379 = vsel %vm1366, %v1378, 0.0
    %1380 = vadd.xlane.f32.xlu0 %v1379
    %v1381 = vpop.xlane.xlu0 %1380
    %v1382 = vrot.slane %v1381, 4
    %v1383 = vadd.f32 %v1381, %v1382
    %v1384 = vrot.slane %v1383, 2
    %v1385 = vadd.f32 %v1383, %v1384
    %v1386 = vrot.slane %v1385, 1
    %v1387 = vadd.f32 %v1385, %v1386
    %s1388 = vtos %v1387
    %v1389 = vstv %s1388
    %v1390 = vmul.f32 %v1377, 0.0078125
    %v1391 = vmul.f32 %v1389, 0.0078125
    %v1392 = vmul.f32 %v1390, %v1390
    %v1393 = vsub.f32 %v1391, %v1392
    %v1394 = vld [vmem:[#allocation11 + $0x3] sm:$0x1]
    %v1395 = vadd.f32 %v1393, 1e-05
    %v1396 = vrsqrt.pop %v1395
    %v1397 = vmul.f32 %v1394, %v1396
    %v1398 = vld [vmem:[#allocation11 + $0x7] sm:$0x1]
    %v1399 = vmul.f32 %v1390, %v1397
    %v1400 = vsub.f32 %v1398, %v1399
    %1402 = vset.pattern.permute.xlu0 0
    %1403 = vperm.xlu0 %1402, %v1397
    %v1404 = vpop.permute.xlu0 %1403
    %v1406 = vmul.f32 %v1361, %v1404
    %1408 = vset.pattern.permute.xlu0 0
    %1409 = vperm.xlu0 %1408, %v1400
    %v1410 = vpop.permute.xlu0 %1409
    %v1412 = vadd.f32 %v1406, %v1410
    %v1413 = vmax.f32 %v1412, 0.0
    %1414 = vst [vmem:[#allocation13] sm:$0x1] %v1413
    // Predicated region
    $region50: #{relationnet_forward.1} parent=1 // pred_check
      _
    $region51: #{relationnet_forward.1} parent=1 // pred_check_branch
      %1416 = sbr.rel (0) target = $region53
    $region52: #{relationnet_forward.1} parent=1 // pred_region
      %s1418 = ssub.s32 16, 16
      %1419 = vsyncadd [#allocation4], %s1418
      %s1421 = sshll.u32 [#allocation13], 4
      %s1422 = int_to_ptr.vmem [resolvable:$true] %s1421
      %1424 = dma.vmem_to_hbm [thread:$0]  %s1422, 16, %s6, [#allocation4]
    $region53: #{relationnet_forward.1} parent=1 // pred_fallthru
      _
    // Predicated region
    $region54: #{relationnet_forward.1} parent=1 // pred_check
      _
    $region55: #{relationnet_forward.1} parent=1 // pred_check_branch
      %1426 = sbr.rel (0) target = $region57
    $region56: #{relationnet_forward.1} parent=1 // pred_region
      %1427 = dma.done [#allocation4], 16
    $region57: #{relationnet_forward.1} parent=1 // pred_fallthru
      _
    %1428 = vsyncpa [#allocation3], 1
    %1429 = vsyncpa [#allocation6], 1
    %1430 = vsyncpa [#allocation9], 1
    %1431 = vsyncpa [#allocation12], 1
    %1432 = vsyncpa [#allocation4], 1

</llo_original>
